<compile_context>
chip_gen: v6e
topology: v6e:2x2x1
jax: 0.10.0
libtpu: 0.0.40
codegen_flags: <defaults>
</compile_context>

<pallas_src>
import functools

import jax
import jax.numpy as jnp
from jax.experimental import pallas as pl
from jax.experimental.pallas import tpu as pltpu

NUM_CLASSES = 1000


# ------------------------------ fused kernel -------------------------------

def _fused_conv_gap_head_kernel(x_ref, wc_ref, bc_ref, wf_ref, bf_ref,
                                out_ref, pool_ref, *,
                                th, W, cin, cmid_pad, ncls_real, ncls_pad,
                                inv_hw):
    """One grid step = one halo'd row slab of one image.

    x_ref   : [1, 1, th+2, W+2, cin]   bf16  (padded NHWC row slab)
    wc_ref  : [3, 3, cin, cmid_pad]    bf16  (conv weight, dh/dw/cin/cout)
    bc_ref  : [1, cmid_pad]            f32
    wf_ref  : [cmid_pad, ncls_pad]     f32
    bf_ref  : [1, ncls_pad]            f32
    out_ref : [1, 1, ncls_pad]         f32   (softmax probs, padded classes ~0)
    pool_ref: [1, cmid_pad]            f32   (running GAP accumulator, scratch)
    """
    t = pl.program_id(1)

    @pl.when(t == 0)
    def _():
        pool_ref[...] = jnp.zeros_like(pool_ref)

    # ---- 3x3 conv (stride 1, pad 1) as 9 shifted matmuls, f32 accumulation ----
    x = x_ref[0, 0]                                            # [th+2, W+2, cin]
    acc = jnp.zeros((th * W, cmid_pad), jnp.float32)
    for dh in range(3):
        for dw in range(3):
            xs = x[dh:dh + th, dw:dw + W, :].reshape(th * W, cin)   # bf16
            acc = acc + jnp.dot(xs, wc_ref[dh, dw],
                                preferred_element_type=jnp.float32)
    feat = jnp.maximum(acc + bc_ref[...], 0.0)                 # [th*W, cmid_pad]

    # ---- global-average-pool accumulation on the MXU: (1/HW) * ones @ feat ----
    ones = jnp.full((1, th * W), inv_hw, jnp.float32)
    pool_ref[...] += jnp.dot(ones, feat, preferred_element_type=jnp.float32)

    # ---- head (linear + masked softmax) only on the last row tile ----
    @pl.when(t == pl.num_programs(1) - 1)
    def _():
        logits = jnp.dot(pool_ref[...], wf_ref[...],
                         preferred_element_type=jnp.float32) + bf_ref[...]
        lane = jax.lax.broadcasted_iota(jnp.int32, (1, ncls_pad), 1)
        logits = jnp.where(lane < ncls_real, logits, -1e30)    # mask padded classes
        m = jnp.max(logits, axis=-1, keepdims=True)
        e = jnp.exp(logits - m)
        inv = pl.reciprocal(jnp.sum(e, axis=-1, keepdims=True), approx=True)
        out_ref[0] = e * inv


# -------------------------------- wrapper -----------------------------------

def classification_backbone_forward(x_nchw, params, *, row_tile=8):
    """Eval-mode ClassificationBackbone forward: softmax probs [B, 1000]."""
    w_conv, b_conv, w_fc, b_fc = (params["w_conv"], params["b_conv"],
                                  params["w_fc"], params["b_fc"])
    B, C, H, W = x_nchw.shape
    cmid = w_conv.shape[0]          # torch Conv2d weight: [Cmid, Cin, 3, 3]
    ncls = w_fc.shape[0]            # torch Linear weight: [ncls, Cmid]

    cmid_pad = ((cmid + 127) // 128) * 128      # lane-dense feature channels
    ncls_pad = ((ncls + 127) // 128) * 128      # lane-dense class logits

    th = row_tile if (H % row_tile == 0) else H
    n_t = H // th

    # ---- parameter repacking (layout plumbing, traced once under jit) ----
    wc = jnp.transpose(w_conv, (2, 3, 1, 0))                    # [3,3,Cin,Cmid]
    wc = jnp.pad(wc, ((0, 0), (0, 0), (0, 0), (0, cmid_pad - cmid)))
    wc = wc.astype(jnp.bfloat16)
    bc = jnp.pad(b_conv, (0, cmid_pad - cmid)).reshape(1, cmid_pad)
    bc = bc.astype(jnp.float32)
    wf = jnp.pad(w_fc.T, ((0, cmid_pad - cmid), (0, ncls_pad - ncls)))
    wf = wf.astype(jnp.float32)
    bf = jnp.pad(b_fc, (0, ncls_pad - ncls)).reshape(1, ncls_pad)
    bf = bf.astype(jnp.float32)

    # ---- NCHW -> NHWC, pad=1 halo, split into overlapping row slabs ----
    x_nhwc = jnp.transpose(x_nchw, (0, 2, 3, 1))
    xp = jnp.pad(x_nhwc, ((0, 0), (1, 1), (1, 1), (0, 0)))      # [B, H+2, W+2, C]
    x_tiles = jnp.stack([xp[:, t * th:t * th + th + 2, :, :] for t in range(n_t)],
                        axis=1).astype(jnp.bfloat16)            # [B, n_t, th+2, W+2, C]

    kernel = functools.partial(
        _fused_conv_gap_head_kernel,
        th=th, W=W, cin=C, cmid_pad=cmid_pad,
        ncls_real=ncls, ncls_pad=ncls_pad, inv_hw=1.0 / (H * W))

    probs_pad = pl.pallas_call(
        kernel,
        out_shape=jax.ShapeDtypeStruct((B, 1, ncls_pad), jnp.float32),
        grid=(B, n_t),
        in_specs=[
            pl.BlockSpec((1, 1, th + 2, W + 2, C), lambda b, t: (b, t, 0, 0, 0)),
            pl.BlockSpec((3, 3, C, cmid_pad), lambda b, t: (0, 0, 0, 0)),
            pl.BlockSpec((1, cmid_pad), lambda b, t: (0, 0)),
            pl.BlockSpec((cmid_pad, ncls_pad), lambda b, t: (0, 0)),
            pl.BlockSpec((1, ncls_pad), lambda b, t: (0, 0)),
        ],
        out_specs=pl.BlockSpec((1, 1, ncls_pad), lambda b, t: (b, 0, 0)),
        scratch_shapes=[pltpu.VMEM((1, cmid_pad), jnp.float32)],
        compiler_params=pltpu.CompilerParams(
            dimension_semantics=("parallel", "arbitrary")),
    )(x_tiles, wc, bc, wf, bf)

    return probs_pad[:, 0, :ncls]


# ------------------------------ params / reference --------------------------

def init_params(key, cin=4, cmid=32, num_classes=1000):
    k1, k2, k3, k4 = jax.random.split(key, 4)
    # PyTorch layouts: Conv2d weight [Cmid, Cin, 3, 3]; Linear weight [out, in].
    w_conv = jax.random.normal(k1, (cmid, cin, 3, 3), jnp.float32) * 0.05
    b_conv = jax.random.normal(k2, (cmid,), jnp.float32) * 0.01
    w_fc = jax.random.normal(k3, (num_classes, cmid), jnp.float32) * 0.05
    b_fc = jax.random.normal(k4, (num_classes,), jnp.float32) * 0.01
    return {"w_conv": w_conv, "b_conv": b_conv, "w_fc": w_fc, "b_fc": b_fc}


def _reference_forward(x_nchw, params):
    """Pure-JAX f32 reference matching the PyTorch forward semantics."""
    w_conv, b_conv, w_fc, b_fc = (params["w_conv"], params["b_conv"],
                                  params["w_fc"], params["b_fc"])
    y = jax.lax.conv_general_dilated(
        x_nchw, w_conv, window_strides=(1, 1), padding=((1, 1), (1, 1)),
        dimension_numbers=("NCHW", "OIHW", "NCHW"))
    y = jnp.maximum(y + b_conv[None, :, None, None], 0.0)
    pooled = jnp.mean(y, axis=(2, 3))                    # global average pool
    logits = pooled @ w_fc.T + b_fc                      # torch Linear
    return jax.nn.softmax(logits, axis=-1)


# ---------------------------------- main -------------------------------------

if __name__ == "__main__":
    B, C, H, W = 2, 4, 16, 16

    key = jax.random.PRNGKey(0)
    kx, kp = jax.random.split(key)
    # "preprocess_image" equivalent: a batched, normalized NCHW image tensor.
    x = jax.random.normal(kx, (B, C, H, W), jnp.float32)
    params = init_params(kp, cin=C, cmid=32, num_classes=NUM_CLASSES)

    probs = jax.jit(classification_backbone_forward)(x, params)
    probs = jax.block_until_ready(probs)

    assert probs.shape == (B, NUM_CLASSES)
    assert bool(jnp.all(jnp.isfinite(probs)))
    # softmax rows sum to 1 (loose: approx reciprocal + bf16 MXU operands)
    assert bool(jnp.allclose(jnp.sum(probs, axis=-1), 1.0, atol=2e-3))
    # matches the f32 pure-JAX reference forward
    ref = _reference_forward(x, params)
    assert bool(jnp.allclose(probs, ref, rtol=1e-2, atol=1e-6))

    print("KERNEL_OK")
</pallas_src>

<mosaic_0001>
module attributes {stable_mosaic.version = 11 : i64} {
  func.func @_fused_conv_gap_head_kernel(%arg0: i32, %arg1: i32, %arg2: memref<1x1x10x18x4xbf16, #tpu.memory_space<vmem>>, %arg3: memref<3x3x4x128xbf16, #tpu.memory_space<vmem>>, %arg4: memref<1x128xf32, #tpu.memory_space<vmem>>, %arg5: memref<128x1024xf32, #tpu.memory_space<vmem>>, %arg6: memref<1x1024xf32, #tpu.memory_space<vmem>>, %arg7: memref<1x1x1024xf32, #tpu.memory_space<vmem>>, %arg8: memref<1x128xf32, #tpu.memory_space<vmem>>) attributes {dimension_semantics = [#tpu.dimension_semantics<parallel>, #tpu.dimension_semantics<arbitrary>], iteration_bounds = array<i64: 2, 2>, scalar_prefetch = 0 : i64, scratch_operands = 1 : i64, tpu.core_type = #tpu.core_type<tc>, window_params = [{transform_indices = @transform_0, window_bounds = array<i64: 1, 1, 10, 18, 4>}, {pipeline_mode = #tpu.pipeline_mode<synchronous>, transform_indices = @transform_1, window_bounds = array<i64: 3, 3, 4, 128>}, {pipeline_mode = #tpu.pipeline_mode<synchronous>, transform_indices = @transform_2, window_bounds = array<i64: 1, 128>}, {pipeline_mode = #tpu.pipeline_mode<synchronous>, transform_indices = @transform_3, window_bounds = array<i64: 128, 1024>}, {pipeline_mode = #tpu.pipeline_mode<synchronous>, transform_indices = @transform_4, window_bounds = array<i64: 1, 1024>}, {transform_indices = @transform_5, window_bounds = array<i64: 1, 1, 1024>}]} {
    %c0_i32 = arith.constant 0 : i32
    %0 = arith.cmpi eq, %arg1, %c0_i32 : i32
    %1 = arith.extui %0 : i1 to i32
    %c0_i32_0 = arith.constant 0 : i32
    %2 = arith.cmpi ne, %1, %c0_i32_0 : i32
    scf.if %2 {
      %cst_58 = arith.constant 0.000000e+00 : f32
      %73 = vector.broadcast %cst_58 : f32 to vector<1x128xf32>
      %c0_59 = arith.constant 0 : index
      %c0_60 = arith.constant 0 : index
      %74 = vector.load %arg8[%c0_59, %c0_60] : memref<1x128xf32, #tpu.memory_space<vmem>>, vector<1x128xf32>
      tpu.vector_store %arg8[%c0_59, %c0_60], %73 {strides = array<i32>} : memref<1x128xf32, #tpu.memory_space<vmem>>, vector<1x128xf32>,
    } else {
    }
    %c0 = arith.constant 0 : index
    %c0_1 = arith.constant 0 : index
    %c0_2 = arith.constant 0 : index
    %c0_3 = arith.constant 0 : index
    %c0_4 = arith.constant 0 : index
    %3 = vector.load %arg2[%c0, %c0_1, %c0_2, %c0_3, %c0_4] : memref<1x1x10x18x4xbf16, #tpu.memory_space<vmem>>, vector<1x1x10x18x4xbf16>
    %4 = vector.shape_cast %3 : vector<1x1x10x18x4xbf16> to vector<10x18x4xbf16>
    %cst = arith.constant 0.000000e+00 : f32
    %5 = vector.broadcast %cst : f32 to vector<128x128xf32>
    %6 = vector.extract_strided_slice %4 {offsets = [0, 0, 0], sizes = [8, 16, 4], strides = [1, 1, 1]} : vector<10x18x4xbf16> to vector<8x16x4xbf16>
    %7 = vector.shape_cast %6 : vector<8x16x4xbf16> to vector<128x4xbf16>
    %c0_5 = arith.constant 0 : index
    %c0_6 = arith.constant 0 : index
    %c0_7 = arith.constant 0 : index
    %c0_8 = arith.constant 0 : index
    %8 = vector.load %arg3[%c0_5, %c0_6, %c0_7, %c0_8] : memref<3x3x4x128xbf16, #tpu.memory_space<vmem>>, vector<1x1x4x128xbf16>
    %9 = vector.shape_cast %8 : vector<1x1x4x128xbf16> to vector<4x128xbf16>
    %cst_9 = arith.constant dense<0.000000e+00> : vector<128x128xf32>
    %10 = tpu.matmul %7, %9, %cst_9 {dimension_numbers = #tpu.dot_dimension_numbers<[1], [0], [0], [1], [0, 0, 1, 1], [], []>} : vector<128x4xbf16>, vector<4x128xbf16>, vector<128x128xf32> -> vector<128x128xf32>
    %11 = arith.addf %5, %10 : vector<128x128xf32>
    %12 = vector.extract_strided_slice %4 {offsets = [0, 1, 0], sizes = [8, 16, 4], strides = [1, 1, 1]} : vector<10x18x4xbf16> to vector<8x16x4xbf16>
    %13 = vector.shape_cast %12 : vector<8x16x4xbf16> to vector<128x4xbf16>
    %c0_10 = arith.constant 0 : index
    %c1 = arith.constant 1 : index
    %c0_11 = arith.constant 0 : index
    %c0_12 = arith.constant 0 : index
    %14 = vector.load %arg3[%c0_10, %c1, %c0_11, %c0_12] : memref<3x3x4x128xbf16, #tpu.memory_space<vmem>>, vector<1x1x4x128xbf16>
    %15 = vector.shape_cast %14 : vector<1x1x4x128xbf16> to vector<4x128xbf16>
    %cst_13 = arith.constant dense<0.000000e+00> : vector<128x128xf32>
    %16 = tpu.matmul %13, %15, %cst_13 {dimension_numbers = #tpu.dot_dimension_numbers<[1], [0], [0], [1], [0, 0, 1, 1], [], []>} : vector<128x4xbf16>, vector<4x128xbf16>, vector<128x128xf32> -> vector<128x128xf32>
    %17 = arith.addf %11, %16 : vector<128x128xf32>
    %18 = vector.extract_strided_slice %4 {offsets = [0, 2, 0], sizes = [8, 16, 4], strides = [1, 1, 1]} : vector<10x18x4xbf16> to vector<8x16x4xbf16>
    %19 = vector.shape_cast %18 : vector<8x16x4xbf16> to vector<128x4xbf16>
    %c0_14 = arith.constant 0 : index
    %c2 = arith.constant 2 : index
    %c0_15 = arith.constant 0 : index
    %c0_16 = arith.constant 0 : index
    %20 = vector.load %arg3[%c0_14, %c2, %c0_15, %c0_16] : memref<3x3x4x128xbf16, #tpu.memory_space<vmem>>, vector<1x1x4x128xbf16>
    %21 = vector.shape_cast %20 : vector<1x1x4x128xbf16> to vector<4x128xbf16>
    %cst_17 = arith.constant dense<0.000000e+00> : vector<128x128xf32>
    %22 = tpu.matmul %19, %21, %cst_17 {dimension_numbers = #tpu.dot_dimension_numbers<[1], [0], [0], [1], [0, 0, 1, 1], [], []>} : vector<128x4xbf16>, vector<4x128xbf16>, vector<128x128xf32> -> vector<128x128xf32>
    %23 = arith.addf %17, %22 : vector<128x128xf32>
    %24 = vector.extract_strided_slice %4 {offsets = [1, 0, 0], sizes = [8, 16, 4], strides = [1, 1, 1]} : vector<10x18x4xbf16> to vector<8x16x4xbf16>
    %25 = vector.shape_cast %24 : vector<8x16x4xbf16> to vector<128x4xbf16>
    %c1_18 = arith.constant 1 : index
    %c0_19 = arith.constant 0 : index
    %c0_20 = arith.constant 0 : index
    %c0_21 = arith.constant 0 : index
    %26 = vector.load %arg3[%c1_18, %c0_19, %c0_20, %c0_21] : memref<3x3x4x128xbf16, #tpu.memory_space<vmem>>, vector<1x1x4x128xbf16>
    %27 = vector.shape_cast %26 : vector<1x1x4x128xbf16> to vector<4x128xbf16>
    %cst_22 = arith.constant dense<0.000000e+00> : vector<128x128xf32>
    %28 = tpu.matmul %25, %27, %cst_22 {dimension_numbers = #tpu.dot_dimension_numbers<[1], [0], [0], [1], [0, 0, 1, 1], [], []>} : vector<128x4xbf16>, vector<4x128xbf16>, vector<128x128xf32> -> vector<128x128xf32>
    %29 = arith.addf %23, %28 : vector<128x128xf32>
    %30 = vector.extract_strided_slice %4 {offsets = [1, 1, 0], sizes = [8, 16, 4], strides = [1, 1, 1]} : vector<10x18x4xbf16> to vector<8x16x4xbf16>
    %31 = vector.shape_cast %30 : vector<8x16x4xbf16> to vector<128x4xbf16>
    %c1_23 = arith.constant 1 : index
    %c1_24 = arith.constant 1 : index
    %c0_25 = arith.constant 0 : index
    %c0_26 = arith.constant 0 : index
    %32 = vector.load %arg3[%c1_23, %c1_24, %c0_25, %c0_26] : memref<3x3x4x128xbf16, #tpu.memory_space<vmem>>, vector<1x1x4x128xbf16>
    %33 = vector.shape_cast %32 : vector<1x1x4x128xbf16> to vector<4x128xbf16>
    %cst_27 = arith.constant dense<0.000000e+00> : vector<128x128xf32>
    %34 = tpu.matmul %31, %33, %cst_27 {dimension_numbers = #tpu.dot_dimension_numbers<[1], [0], [0], [1], [0, 0, 1, 1], [], []>} : vector<128x4xbf16>, vector<4x128xbf16>, vector<128x128xf32> -> vector<128x128xf32>
    %35 = arith.addf %29, %34 : vector<128x128xf32>
    %36 = vector.extract_strided_slice %4 {offsets = [1, 2, 0], sizes = [8, 16, 4], strides = [1, 1, 1]} : vector<10x18x4xbf16> to vector<8x16x4xbf16>
    %37 = vector.shape_cast %36 : vector<8x16x4xbf16> to vector<128x4xbf16>
    %c1_28 = arith.constant 1 : index
    %c2_29 = arith.constant 2 : index
    %c0_30 = arith.constant 0 : index
    %c0_31 = arith.constant 0 : index
    %38 = vector.load %arg3[%c1_28, %c2_29, %c0_30, %c0_31] : memref<3x3x4x128xbf16, #tpu.memory_space<vmem>>, vector<1x1x4x128xbf16>
    %39 = vector.shape_cast %38 : vector<1x1x4x128xbf16> to vector<4x128xbf16>
    %cst_32 = arith.constant dense<0.000000e+00> : vector<128x128xf32>
    %40 = tpu.matmul %37, %39, %cst_32 {dimension_numbers = #tpu.dot_dimension_numbers<[1], [0], [0], [1], [0, 0, 1, 1], [], []>} : vector<128x4xbf16>, vector<4x128xbf16>, vector<128x128xf32> -> vector<128x128xf32>
    %41 = arith.addf %35, %40 : vector<128x128xf32>
    %42 = vector.extract_strided_slice %4 {offsets = [2, 0, 0], sizes = [8, 16, 4], strides = [1, 1, 1]} : vector<10x18x4xbf16> to vector<8x16x4xbf16>
    %43 = vector.shape_cast %42 : vector<8x16x4xbf16> to vector<128x4xbf16>
    %c2_33 = arith.constant 2 : index
    %c0_34 = arith.constant 0 : index
    %c0_35 = arith.constant 0 : index
    %c0_36 = arith.constant 0 : index
    %44 = vector.load %arg3[%c2_33, %c0_34, %c0_35, %c0_36] : memref<3x3x4x128xbf16, #tpu.memory_space<vmem>>, vector<1x1x4x128xbf16>
    %45 = vector.shape_cast %44 : vector<1x1x4x128xbf16> to vector<4x128xbf16>
    %cst_37 = arith.constant dense<0.000000e+00> : vector<128x128xf32>
    %46 = tpu.matmul %43, %45, %cst_37 {dimension_numbers = #tpu.dot_dimension_numbers<[1], [0], [0], [1], [0, 0, 1, 1], [], []>} : vector<128x4xbf16>, vector<4x128xbf16>, vector<128x128xf32> -> vector<128x128xf32>
    %47 = arith.addf %41, %46 : vector<128x128xf32>
    %48 = vector.extract_strided_slice %4 {offsets = [2, 1, 0], sizes = [8, 16, 4], strides = [1, 1, 1]} : vector<10x18x4xbf16> to vector<8x16x4xbf16>
    %49 = vector.shape_cast %48 : vector<8x16x4xbf16> to vector<128x4xbf16>
    %c2_38 = arith.constant 2 : index
    %c1_39 = arith.constant 1 : index
    %c0_40 = arith.constant 0 : index
    %c0_41 = arith.constant 0 : index
    %50 = vector.load %arg3[%c2_38, %c1_39, %c0_40, %c0_41] : memref<3x3x4x128xbf16, #tpu.memory_space<vmem>>, vector<1x1x4x128xbf16>
    %51 = vector.shape_cast %50 : vector<1x1x4x128xbf16> to vector<4x128xbf16>
    %cst_42 = arith.constant dense<0.000000e+00> : vector<128x128xf32>
    %52 = tpu.matmul %49, %51, %cst_42 {dimension_numbers = #tpu.dot_dimension_numbers<[1], [0], [0], [1], [0, 0, 1, 1], [], []>} : vector<128x4xbf16>, vector<4x128xbf16>, vector<128x128xf32> -> vector<128x128xf32>
    %53 = arith.addf %47, %52 : vector<128x128xf32>
    %54 = vector.extract_strided_slice %4 {offsets = [2, 2, 0], sizes = [8, 16, 4], strides = [1, 1, 1]} : vector<10x18x4xbf16> to vector<8x16x4xbf16>
    %55 = vector.shape_cast %54 : vector<8x16x4xbf16> to vector<128x4xbf16>
    %c2_43 = arith.constant 2 : index
    %c2_44 = arith.constant 2 : index
    %c0_45 = arith.constant 0 : index
    %c0_46 = arith.constant 0 : index
    %56 = vector.load %arg3[%c2_43, %c2_44, %c0_45, %c0_46] : memref<3x3x4x128xbf16, #tpu.memory_space<vmem>>, vector<1x1x4x128xbf16>
    %57 = vector.shape_cast %56 : vector<1x1x4x128xbf16> to vector<4x128xbf16>
    %cst_47 = arith.constant dense<0.000000e+00> : vector<128x128xf32>
    %58 = tpu.matmul %55, %57, %cst_47 {dimension_numbers = #tpu.dot_dimension_numbers<[1], [0], [0], [1], [0, 0, 1, 1], [], []>} : vector<128x4xbf16>, vector<4x128xbf16>, vector<128x128xf32> -> vector<128x128xf32>
    %59 = arith.addf %53, %58 : vector<128x128xf32>
    %c0_48 = arith.constant 0 : index
    %c0_49 = arith.constant 0 : index
    %60 = vector.load %arg4[%c0_48, %c0_49] : memref<1x128xf32, #tpu.memory_space<vmem>>, vector<1x128xf32>
    %61 = vector.broadcast %60 : vector<1x128xf32> to vector<128x128xf32>
    %62 = arith.addf %59, %61 : vector<128x128xf32>
    %cst_50 = arith.constant 0.000000e+00 : f32
    %63 = vector.broadcast %cst_50 : f32 to vector<128x128xf32>
    %64 = arith.maximumf %62, %63 : vector<128x128xf32>
    %cst_51 = arith.constant 3.906250e-03 : f32
    %65 = vector.broadcast %cst_51 : f32 to vector<1x128xf32>
    %c0_52 = arith.constant 0 : index
    %c0_53 = arith.constant 0 : index
    %66 = vector.load %arg8[%c0_52, %c0_53] : memref<1x128xf32, #tpu.memory_space<vmem>>, vector<1x128xf32>
    %cst_54 = arith.constant dense<0.000000e+00> : vector<1x128xf32>
    %67 = tpu.matmul %65, %64, %cst_54 {dimension_numbers = #tpu.dot_dimension_numbers<[1], [0], [0], [1], [0, 0, 1, 1], [], []>} : vector<1x128xf32>, vector<128x128xf32>, vector<1x128xf32> -> vector<1x128xf32>
    %68 = arith.addf %66, %67 : vector<1x128xf32>
    %c0_55 = arith.constant 0 : index
    %c0_56 = arith.constant 0 : index
    %69 = vector.load %arg8[%c0_55, %c0_56] : memref<1x128xf32, #tpu.memory_space<vmem>>, vector<1x128xf32>
    tpu.vector_store %arg8[%c0_55, %c0_56], %68 {strides = array<i32>} : memref<1x128xf32, #tpu.memory_space<vmem>>, vector<1x128xf32>,
    %c1_i32 = arith.constant 1 : i32
    %70 = arith.cmpi eq, %arg1, %c1_i32 : i32
    %71 = arith.extui %70 : i1 to i32
    %c0_i32_57 = arith.constant 0 : i32
    %72 = arith.cmpi ne, %71, %c0_i32_57 : i32
    scf.if %72 {
      %c0_58 = arith.constant 0 : index
      %c0_59 = arith.constant 0 : index
      %73 = vector.load %arg8[%c0_58, %c0_59] : memref<1x128xf32, #tpu.memory_space<vmem>>, vector<1x128xf32>
      %c0_60 = arith.constant 0 : index
      %c0_61 = arith.constant 0 : index
      %74 = vector.load %arg5[%c0_60, %c0_61] : memref<128x1024xf32, #tpu.memory_space<vmem>>, vector<128x1024xf32>
      %cst_62 = arith.constant dense<0.000000e+00> : vector<1x1024xf32>
      %75 = tpu.matmul %73, %74, %cst_62 {dimension_numbers = #tpu.dot_dimension_numbers<[1], [0], [0], [1], [0, 0, 1, 1], [], []>} : vector<1x128xf32>, vector<128x1024xf32>, vector<1x1024xf32> -> vector<1x1024xf32>
      %c0_63 = arith.constant 0 : index
      %c0_64 = arith.constant 0 : index
      %76 = vector.load %arg6[%c0_63, %c0_64] : memref<1x1024xf32, #tpu.memory_space<vmem>>, vector<1x1024xf32>
      %77 = arith.addf %75, %76 : vector<1x1024xf32>
      %78 = tpu.iota {dimensions = array<i32: 1>} : vector<1x1024xi32>
      %c1000_i32 = arith.constant 1000 : i32
      %79 = vector.broadcast %c1000_i32 : i32 to vector<1x1024xi32>
      %80 = arith.cmpi slt, %78, %79 : vector<1x1024xi32>
      %cst_65 = arith.constant -1.000000e+30 : f32
      %81 = vector.broadcast %cst_65 : f32 to vector<1x1024xf32>
      %82 = arith.select %80, %77, %81 : vector<1x1024xi1>, vector<1x1024xf32>
      %cst_66 = arith.constant dense<0xFF800000> : vector<1xf32>
      %83 = vector.multi_reduction <maximumf>, %82, %cst_66 [1] : vector<1x1024xf32> to vector<1xf32>
      %84 = vector.shape_cast %83 : vector<1xf32> to vector<1x1xf32>
      %85 = vector.broadcast %84 : vector<1x1xf32> to vector<1x1024xf32>
      %86 = arith.subf %82, %85 : vector<1x1024xf32>
      %87 = math.exp %86 : vector<1x1024xf32>
      %cst_67 = arith.constant dense<0.000000e+00> : vector<1xf32>
      %88 = vector.multi_reduction <add>, %87, %cst_67 [1] : vector<1x1024xf32> to vector<1xf32>
      %89 = vector.shape_cast %88 : vector<1xf32> to vector<1x1xf32>
      %90 = tpu.reciprocal %89 {approx = true} : vector<1x1xf32> -> vector<1x1xf32>
      %91 = vector.broadcast %90 : vector<1x1xf32> to vector<1x1024xf32>
      %92 = arith.mulf %87, %91 : vector<1x1024xf32>
      %c0_68 = arith.constant 0 : index
      %c0_69 = arith.constant 0 : index
      %c0_70 = arith.constant 0 : index
      %93 = vector.load %arg7[%c0_68, %c0_69, %c0_70] : memref<1x1x1024xf32, #tpu.memory_space<vmem>>, vector<1x1x1024xf32>
      %94 = vector.shape_cast %93 : vector<1x1x1024xf32> to vector<1x1024xf32>
      %95 = vector.shape_cast %92 : vector<1x1024xf32> to vector<1x1x1024xf32>
      tpu.vector_store %arg7[%c0_68, %c0_69, %c0_70], %95 {strides = array<i32>} : memref<1x1x1024xf32, #tpu.memory_space<vmem>>, vector<1x1x1024xf32>,
    } else {
    }
    return
  }
  func.func @transform_0(%arg0: i32, %arg1: i32) -> (i32, i32, i32, i32, i32) {
    %c0_i32 = arith.constant 0 : i32
    %c0_i32_0 = arith.constant 0 : i32
    %c0_i32_1 = arith.constant 0 : i32
    %c0_i32_2 = arith.constant 0 : i32
    return %arg0, %arg1, %c0_i32, %c0_i32_0, %c0_i32_1 : i32, i32, i32, i32, i32
  }
  func.func @transform_1(%arg0: i32, %arg1: i32) -> (i32, i32, i32, i32) {
    %c0_i32 = arith.constant 0 : i32
    %c0_i32_0 = arith.constant 0 : i32
    %c0_i32_1 = arith.constant 0 : i32
    %c0_i32_2 = arith.constant 0 : i32
    %c0_i32_3 = arith.constant 0 : i32
    return %c0_i32, %c0_i32_0, %c0_i32_1, %c0_i32_2 : i32, i32, i32, i32
  }
  func.func @transform_2(%arg0: i32, %arg1: i32) -> (i32, i32) {
    %c0_i32 = arith.constant 0 : i32
    %c0_i32_0 = arith.constant 0 : i32
    %c0_i32_1 = arith.constant 0 : i32
    return %c0_i32, %c0_i32_0 : i32, i32
  }
  func.func @transform_3(%arg0: i32, %arg1: i32) -> (i32, i32) {
    %c0_i32 = arith.constant 0 : i32
    %c0_i32_0 = arith.constant 0 : i32
    %c0_i32_1 = arith.constant 0 : i32
    return %c0_i32, %c0_i32_0 : i32, i32
  }
  func.func @transform_4(%arg0: i32, %arg1: i32) -> (i32, i32) {
    %c0_i32 = arith.constant 0 : i32
    %c0_i32_0 = arith.constant 0 : i32
    %c0_i32_1 = arith.constant 0 : i32
    return %c0_i32, %c0_i32_0 : i32, i32
  }
  func.func @transform_5(%arg0: i32, %arg1: i32) -> (i32, i32, i32) {
    %c0_i32 = arith.constant 0 : i32
    %c0_i32_0 = arith.constant 0 : i32
    %c0_i32_1 = arith.constant 0 : i32
    return %arg0, %c0_i32, %c0_i32_0 : i32, i32, i32
  }
}

</mosaic_0001>

<llo_original>
// kernel: classification_backbone_forward.1
$region0: #{classification_backbone_forward.1}
  #allocation0 [shape = 'u32[]', space=smem, size = 0x4, offset = 0x4, fixed_abs, tag = 'smem constant byte address 0x4 - core index']
  #allocation1 [shape = 'u32[144,128]{1,0:T(1,128)}', space=vmem, size = 0x12000, scoped, tag = 'internal scratch']
  #allocation2 [shape = 'f32[1,128]{1,0:T(1,128)}', space=vmem, size = 0x200, scoped, tag = 'scratch operand']
  %s0 = inlined_call_operand.vmem [shape: bf16[2,2,10,18,4], index: 0, kind: input, shape index: {}]
  %s1 = inlined_call_operand.vmem [shape: bf16[3,3,4,128], index: 1, kind: input, shape index: {}]
  %s2 = inlined_call_operand.vmem [shape: f32[1,128], index: 2, kind: input, shape index: {}]
  %s3 = inlined_call_operand.vmem [shape: f32[128,1024], index: 3, kind: input, shape index: {}]
  %s4 = inlined_call_operand.vmem [shape: f32[1,1024], index: 4, kind: input, shape index: {}]
  %s5 = inlined_call_operand.vmem [shape: f32[2,1,1024], index: 5, kind: output, shape index: {}]
  %s6 = sld [smem:[#allocation0]]
  $region61: #{classification_backbone_forward.1} parent=0
    _
  %s8 = ssub.s32 1, %s6
  %s9 = scalar_select 0, %s8, %s6
  loop: start=0, step=1, limit=6
  $region2: #{classification_backbone_forward.1} parent=0 // loop_pre_header
    _
  $region3: #{classification_backbone_forward.1} parent=0 // loop_header
    %s11 = sphi 0, %s15
    %p12 = scmp.ge.s32.totalorder %s11, 6
    %s18 = sphi 0, %s30
    %s19 = sphi 0, %s26
    %s20 = sphi 0, %s18
    %s21 = sphi 0, %s19
    %s22 = sphi 0, %s20
    %s23 = sphi 0, %s21
    %s35 = sphi 0, %s37
    %s38 = sphi 0, %s35
    %s39 = sphi 0, %s38
    %s55 = sphi 0, %s39
    %s59 = sphi 0, %s59
    %s61 = sphi 0, %s59
    %s62 = sphi 0, %s61
    %s76 = sphi 0, %s62
    %s80 = sphi 0, %s80
    %s82 = sphi 0, %s80
    %s83 = sphi 0, %s82
    %s97 = sphi 0, %s83
    %s101 = sphi 0, %s101
    %s103 = sphi 0, %s101
    %s104 = sphi 0, %s103
    %s118 = sphi 0, %s104
    %s122 = sphi 0, %s122
    %s124 = sphi 0, %s122
    %s125 = sphi 0, %s124
    %s139 = sphi 0, %s125
    %s145 = sphi 0, %s147
    %s148 = sphi 0, %s145
    %s149 = sphi 0, %s148
    %s165 = sphi 0, %s149
  $region4: #{classification_backbone_forward.1} parent=0 // loop_header_branch
    %14 = sbr.rel (%p12) target = $region8
  $region5: #{classification_backbone_forward.1} parent=0 // loop_body
    %s16 = ssub.s32 %s11, 1
    %s17 = ssub.s32 %s11, 2
    %s24 = sadd.s32 1, %s19
    %p25 = scmp.ge.s32.totalorder %s24, 2
    %s26 = scalar_select %p25, 0, %s24
    %s27 = sadd.s32 1, %s18
    %s28 = scalar_select %p25, %s27, %s18
    %p29 = scmp.ge.s32.totalorder %s28, 2
    %s30 = scalar_select %p29, 0, %s28
    %s31 = ssub.s32 %s18, %s30
    %s32 = ssub.s32 %s19, %s26
    %s33 = sor.u32 %s31, %s32
    %p34 = scmp.eq.s32.totalorder %s33, 0
    %s36 = sadd.s32 %s35, 1
    %s37 = scalar_select %p34, %s35, %s36
    %p40 = pneg %p34
    %p41 = scmp.eq.s32.totalorder %s11, 3
    %p42 = por %p40, %p41
    %p43 = scmp.ne.s32.totalorder %s35, %s38
    %p44 = scmp.eq.s32.totalorder %s11, 0
    %p45 = por %p43, %p44
    %p46 = scmp.ne.s32.totalorder %s35, %s38
    %p47 = scmp.eq.s32.totalorder %s16, 3
    %p48 = por %p46, %p47
    %p49 = scmp.ne.s32.totalorder %s38, %s39
    %p50 = scmp.eq.s32.totalorder %s16, 0
    %p51 = por %p49, %p50
    %p52 = scmp.ne.s32.totalorder %s38, %s39
    %p53 = scmp.eq.s32.totalorder %s17, 3
    %p54 = por %p52, %p53
    %p56 = scmp.ne.s32.totalorder %s39, %s55
    %p57 = scmp.eq.s32.totalorder %s17, 0
    %p58 = por %p56, %p57
    %s60 = sadd.s32 %s59, 1
    %p63 = scmp.eq.s32.totalorder %s11, 3
    %p64 = scmp.ne.s32.totalorder %s59, %s61
    %p65 = scmp.eq.s32.totalorder %s11, 0
    %p66 = por %p64, %p65
    %p67 = scmp.ne.s32.totalorder %s59, %s61
    %p68 = scmp.eq.s32.totalorder %s16, 3
    %p69 = por %p67, %p68
    %p70 = scmp.ne.s32.totalorder %s61, %s62
    %p71 = scmp.eq.s32.totalorder %s16, 0
    %p72 = por %p70, %p71
    %p73 = scmp.ne.s32.totalorder %s61, %s62
    %p74 = scmp.eq.s32.totalorder %s17, 3
    %p75 = por %p73, %p74
    %p77 = scmp.ne.s32.totalorder %s62, %s76
    %p78 = scmp.eq.s32.totalorder %s17, 0
    %p79 = por %p77, %p78
    %s81 = sadd.s32 %s80, 1
    %p84 = scmp.eq.s32.totalorder %s11, 3
    %p85 = scmp.ne.s32.totalorder %s80, %s82
    %p86 = scmp.eq.s32.totalorder %s11, 0
    %p87 = por %p85, %p86
    %p88 = scmp.ne.s32.totalorder %s80, %s82
    %p89 = scmp.eq.s32.totalorder %s16, 3
    %p90 = por %p88, %p89
    %p91 = scmp.ne.s32.totalorder %s82, %s83
    %p92 = scmp.eq.s32.totalorder %s16, 0
    %p93 = por %p91, %p92
    %p94 = scmp.ne.s32.totalorder %s82, %s83
    %p95 = scmp.eq.s32.totalorder %s17, 3
    %p96 = por %p94, %p95
    %p98 = scmp.ne.s32.totalorder %s83, %s97
    %p99 = scmp.eq.s32.totalorder %s17, 0
    %p100 = por %p98, %p99
    %s102 = sadd.s32 %s101, 1
    %p105 = scmp.eq.s32.totalorder %s11, 3
    %p106 = scmp.ne.s32.totalorder %s101, %s103
    %p107 = scmp.eq.s32.totalorder %s11, 0
    %p108 = por %p106, %p107
    %p109 = scmp.ne.s32.totalorder %s101, %s103
    %p110 = scmp.eq.s32.totalorder %s16, 3
    %p111 = por %p109, %p110
    %p112 = scmp.ne.s32.totalorder %s103, %s104
    %p113 = scmp.eq.s32.totalorder %s16, 0
    %p114 = por %p112, %p113
    %p115 = scmp.ne.s32.totalorder %s103, %s104
    %p116 = scmp.eq.s32.totalorder %s17, 3
    %p117 = por %p115, %p116
    %p119 = scmp.ne.s32.totalorder %s104, %s118
    %p120 = scmp.eq.s32.totalorder %s17, 0
    %p121 = por %p119, %p120
    %s123 = sadd.s32 %s122, 1
    %p126 = scmp.eq.s32.totalorder %s11, 3
    %p127 = scmp.ne.s32.totalorder %s122, %s124
    %p128 = scmp.eq.s32.totalorder %s11, 0
    %p129 = por %p127, %p128
    %p130 = scmp.ne.s32.totalorder %s122, %s124
    %p131 = scmp.eq.s32.totalorder %s16, 3
    %p132 = por %p130, %p131
    %p133 = scmp.ne.s32.totalorder %s124, %s125
    %p134 = scmp.eq.s32.totalorder %s16, 0
    %p135 = por %p133, %p134
    %p136 = scmp.ne.s32.totalorder %s124, %s125
    %p137 = scmp.eq.s32.totalorder %s17, 3
    %p138 = por %p136, %p137
    %p140 = scmp.ne.s32.totalorder %s125, %s139
    %p141 = scmp.eq.s32.totalorder %s17, 0
    %p142 = por %p140, %p141
    %s143 = ssub.s32 %s18, %s30
    %p144 = scmp.eq.s32.totalorder %s143, 0
    %s146 = sadd.s32 %s145, 1
    %s147 = scalar_select %p144, %s145, %s146
    %p150 = pneg %p144
    %p151 = scmp.eq.s32.totalorder %s11, 3
    %p152 = por %p150, %p151
    %p153 = scmp.ne.s32.totalorder %s145, %s148
    %p154 = scmp.eq.s32.totalorder %s11, 0
    %p155 = por %p153, %p154
    %p156 = scmp.ne.s32.totalorder %s145, %s148
    %p157 = scmp.eq.s32.totalorder %s16, 3
    %p158 = por %p156, %p157
    %p159 = scmp.ne.s32.totalorder %s148, %s149
    %p160 = scmp.eq.s32.totalorder %s16, 0
    %p161 = por %p159, %p160
    %p162 = scmp.ne.s32.totalorder %s148, %s149
    %p163 = scmp.eq.s32.totalorder %s17, 3
    %p164 = por %p162, %p163
    %p166 = scmp.ne.s32.totalorder %s149, %s165
    %p167 = scmp.eq.s32.totalorder %s17, 0
    %p168 = por %p166, %p167
    %p169 = scmp.le.s32.totalorder 1, %s11
    %p170 = scmp.lt.s32.totalorder %s11, 5
    %p171 = pnand %p169, %p170
    %p172 = pneg %p171
    // Predicated region
    $region9: #{classification_backbone_forward.1} parent=5 // pred_check
      _
    $region10: #{classification_backbone_forward.1} parent=5 // pred_check_branch
      %174 = sbr.rel (%p171) target = $region12
    $region11: #{classification_backbone_forward.1} parent=5 // pred_region
      %s175 = ssub.s32 %s11, 1
      // Predicated region
      $region13: #{classification_backbone_forward.1} parent=11 // pred_check
        %p176 = pneg %p72
      $region14: #{classification_backbone_forward.1} parent=11 // pred_check_branch
        %178 = sbr.rel (%p176) target = $region16
      $region15: #{classification_backbone_forward.1} parent=11 // pred_region
        _
      $region16: #{classification_backbone_forward.1} parent=11 // pred_fallthru
        _
      // Predicated region
      $region17: #{classification_backbone_forward.1} parent=11 // pred_check
        %p179 = pneg %p93
      $region18: #{classification_backbone_forward.1} parent=11 // pred_check_branch
        %181 = sbr.rel (%p179) target = $region20
      $region19: #{classification_backbone_forward.1} parent=11 // pred_region
        _
      $region20: #{classification_backbone_forward.1} parent=11 // pred_fallthru
        _
      // Predicated region
      $region21: #{classification_backbone_forward.1} parent=11 // pred_check
        %p182 = pneg %p114
      $region22: #{classification_backbone_forward.1} parent=11 // pred_check_branch
        %184 = sbr.rel (%p182) target = $region24
      $region23: #{classification_backbone_forward.1} parent=11 // pred_region
        _
      $region24: #{classification_backbone_forward.1} parent=11 // pred_fallthru
        _
      // Predicated region
      $region25: #{classification_backbone_forward.1} parent=11 // pred_check
        %p185 = pneg %p135
      $region26: #{classification_backbone_forward.1} parent=11 // pred_check_branch
        %187 = sbr.rel (%p185) target = $region28
      $region27: #{classification_backbone_forward.1} parent=11 // pred_region
        _
      $region28: #{classification_backbone_forward.1} parent=11 // pred_fallthru
        _
    $region12: #{classification_backbone_forward.1} parent=5 // pred_fallthru
      _
    %p188 = scmp.lt.s32.totalorder %s11, 4
    // Predicated region
    $region29: #{classification_backbone_forward.1} parent=5 // pred_check
      %p189 = pneg %p188
    $region30: #{classification_backbone_forward.1} parent=5 // pred_check_branch
      %191 = sbr.rel (%p189) target = $region32
    $region31: #{classification_backbone_forward.1} parent=5 // pred_region
      // Predicated region
      $region33: #{classification_backbone_forward.1} parent=31 // pred_check
        %p192 = pneg %p45
      $region34: #{classification_backbone_forward.1} parent=31 // pred_check_branch
        %194 = sbr.rel (%p192) target = $region36
      $region35: #{classification_backbone_forward.1} parent=31 // pred_region
        %p195 = scmp.lt.s32.totalorder %s18, 1
        %s196 = scalar_select %p195, %s18, 1
        %p197 = scmp.lt.s32.totalorder %s19, 1
        %s198 = scalar_select %p197, %s19, 1
        %s199 = smul.addr %s198, 30
        %s200 = smul.addr %s196, 60
        %s201 = sadd.s32 %s199, %s200
        %s202 = smul.addr %s201, 4
        %s203 = scalar_lea.vmem %s0, %s202
      $region36: #{classification_backbone_forward.1} parent=31 // pred_fallthru
        _
    $region32: #{classification_backbone_forward.1} parent=5 // pred_fallthru
      _
    %p204 = scmp.le.s32.totalorder 1, %s11
    %p205 = scmp.lt.s32.totalorder %s11, 5
    %p206 = pnand %p204, %p205
    %p207 = pneg %p206
    // Predicated region
    $region37: #{classification_backbone_forward.1} parent=5 // pred_check
      _
    $region38: #{classification_backbone_forward.1} parent=5 // pred_check_branch
      %209 = sbr.rel (%p206) target = $region40
    $region39: #{classification_backbone_forward.1} parent=5 // pred_region
      %s210 = ssub.s32 %s11, 1
      %p211 = scmp.lt.s32.totalorder %s20, 1
      %s212 = scalar_select %p211, %s20, 1
      %p213 = scmp.lt.s32.totalorder %s21, 1
      %s214 = scalar_select %p213, %s21, 1
      %s215 = smul.addr %s214, 30
      %s216 = smul.addr %s212, 60
      %s217 = sadd.s32 %s215, %s216
      %s218 = smul.addr %s217, 4
      %s219 = scalar_lea.vmem %s0, %s218
      %p220 = pneg %p51
      %p221 = pneg %p48
      %p222 = pneg %p72
      %p223 = pneg %p69
      %p224 = pneg %p93
      %p225 = pneg %p90
      %p226 = pneg %p114
      %p227 = pneg %p111
      %p228 = pneg %p135
      %p229 = pneg %p132
      %p230 = pneg %p161
      %p231 = pneg %p158
      %p232 = scmp.lt.s32.totalorder %s20, 1
      %s233 = scalar_select %p232, %s20, 1
      %s234 = smul.addr %s233, 8
      %s235 = scalar_lea.vmem %s5, %s234
      %p236 = scmp.lt.s32.totalorder %s20, 1
      %s237 = scalar_select %p236, %s20, 1
      %p238 = scmp.lt.s32.totalorder %s21, 1
      %s239 = scalar_select %p238, %s21, 1
      %s240 = smul.addr %s239, 30
      %s241 = smul.addr %s237, 60
      %s242 = sadd.s32 %s240, %s241
      %s243 = smul.addr %s242, 4
      %s244 = scalar_lea.vmem %s0, %s243
      %p245 = scmp.lt.s32.totalorder %s20, 1
      %s246 = scalar_select %p245, %s20, 1
      %s247 = smul.addr %s246, 8
      %s248 = scalar_lea.vmem %s5, %s247
      %p250 = scmp.eq.s32.totalorder %s21, 0
      // Predicated region
      $region41: #{classification_backbone_forward.1} parent=39 // pred_check
        %p251 = pneg %p250
      $region42: #{classification_backbone_forward.1} parent=39 // pred_check_branch
        %253 = sbr.rel (%p251) target = $region44
      $region43: #{classification_backbone_forward.1} parent=39 // pred_region
        %254 = vst [vmem:[#allocation2] sm:$0x1] 0.0
      $region44: #{classification_backbone_forward.1} parent=39 // pred_fallthru
        _
      %v255 = vld [vmem:[%s244] sm:$0xf]
      %v256 = vld [vmem:[%s244 + $0x4] sm:$0xf]
      %v257 = vld [vmem:[%s244 + $0x8] sm:$0x1]
      %v258 = vld [vmem:[%s244 + $0xc] sm:$0xf]
      %v259 = vld [vmem:[%s244 + $0x10] sm:$0xf]
      %v260 = vld [vmem:[%s244 + $0x14] sm:$0x1]
      %v261 = vld [vmem:[%s244 + $0x18] sm:$0xf]
      %v262 = vld [vmem:[%s244 + $0x1c] sm:$0xf]
      %v263 = vld [vmem:[%s244 + $0x20] sm:$0x1]
      %v264 = vld [vmem:[%s244 + $0x24] sm:$0xf]
      %v265 = vld [vmem:[%s244 + $0x28] sm:$0xf]
      %v266 = vld [vmem:[%s244 + $0x2c] sm:$0x1]
      %v267 = vld [vmem:[%s244 + $0x30] sm:$0xf]
      %v268 = vld [vmem:[%s244 + $0x34] sm:$0xf]
      %v269 = vld [vmem:[%s244 + $0x38] sm:$0x1]
      %v270 = vld [vmem:[%s244 + $0x3c] sm:$0xf]
      %v271 = vld [vmem:[%s244 + $0x40] sm:$0xf]
      %v272 = vld [vmem:[%s244 + $0x44] sm:$0x1]
      %v273 = vld [vmem:[%s244 + $0x48] sm:$0xf]
      %v274 = vld [vmem:[%s244 + $0x4c] sm:$0xf]
      %v275 = vld [vmem:[%s244 + $0x50] sm:$0x1]
      %v276 = vld [vmem:[%s244 + $0x54] sm:$0xf]
      %v277 = vld [vmem:[%s244 + $0x58] sm:$0xf]
      %v278 = vld [vmem:[%s244 + $0x5c] sm:$0x1]
      %v279 = vld [vmem:[%s244 + $0x60] sm:$0xf]
      %v280 = vld [vmem:[%s244 + $0x64] sm:$0xf]
      %v281 = vld [vmem:[%s244 + $0x68] sm:$0x1]
      %v282 = vld [vmem:[%s244 + $0x6c] sm:$0xf]
      %v283 = vld [vmem:[%s244 + $0x70] sm:$0xf]
      %v284 = vld [vmem:[%s244 + $0x74] sm:$0x1]
      %v285 = vld [vmem:[%s1] sm:$0x3]
      %vm286 = vsmask.f32 3328
      %vm287 = vsmask.f32 7440
      %vm288 = vmor %vm286, %vm287
      %v290 = vshrl.u32 %v255, 16
      %v292 = vrot.slane %v290, 4
      %v293 = vshll.u32 %v255, 16
      %v295 = vrot.slane %v293, 5
      %v296 = vor.u32 %v292, %v295
      %v297 = vrot.slane %v296, 4
      %v299 = vshll.u32 %v256, 16
      %v301 = vrot.slane %v299, 5
      %v302 = vsel %vm288, %v297, %v301
      %v303 = vshrl.u32 %v256, 16
      %v305 = vrot.slane %v303, 4
      %v306 = vor.u32 %v305, %v301
      %v307 = vrot.slane %v306, 4
      %v309 = vshll.u32 %v257, 16
      %v311 = vrot.slane %v309, 5
      %v312 = vsel %vm288, %v307, %v311
      %v314 = vshrl.u32 %v258, 16
      %v316 = vrot.slane %v314, 4
      %v317 = vshll.u32 %v258, 16
      %v319 = vrot.slane %v317, 5
      %v320 = vor.u32 %v316, %v319
      %v321 = vrot.slane %v320, 4
      %v323 = vshll.u32 %v259, 16
      %v325 = vrot.slane %v323, 5
      %v326 = vsel %vm288, %v321, %v325
      %v327 = vshrl.u32 %v259, 16
      %v329 = vrot.slane %v327, 4
      %v330 = vor.u32 %v329, %v325
      %v331 = vrot.slane %v330, 4
      %v333 = vshll.u32 %v260, 16
      %v335 = vrot.slane %v333, 5
      %v336 = vsel %vm288, %v331, %v335
      %v338 = vshrl.u32 %v261, 16
      %v340 = vrot.slane %v338, 4
      %v341 = vshll.u32 %v261, 16
      %v343 = vrot.slane %v341, 5
      %v344 = vor.u32 %v340, %v343
      %v345 = vrot.slane %v344, 4
      %v347 = vshll.u32 %v262, 16
      %v349 = vrot.slane %v347, 5
      %v350 = vsel %vm288, %v345, %v349
      %v351 = vshrl.u32 %v262, 16
      %v353 = vrot.slane %v351, 4
      %v354 = vor.u32 %v353, %v349
      %v355 = vrot.slane %v354, 4
      %v357 = vshll.u32 %v263, 16
      %v359 = vrot.slane %v357, 5
      %v360 = vsel %vm288, %v355, %v359
      %v362 = vshrl.u32 %v264, 16
      %v364 = vrot.slane %v362, 4
      %v365 = vshll.u32 %v264, 16
      %v367 = vrot.slane %v365, 5
      %v368 = vor.u32 %v364, %v367
      %v369 = vrot.slane %v368, 4
      %v371 = vshll.u32 %v265, 16
      %v373 = vrot.slane %v371, 5
      %v374 = vsel %vm288, %v369, %v373
      %v375 = vshrl.u32 %v265, 16
      %v377 = vrot.slane %v375, 4
      %v378 = vor.u32 %v377, %v373
      %v379 = vrot.slane %v378, 4
      %v381 = vshll.u32 %v266, 16
      %v383 = vrot.slane %v381, 5
      %v384 = vsel %vm288, %v379, %v383
      %v386 = vshrl.u32 %v267, 16
      %v388 = vrot.slane %v386, 4
      %v389 = vshll.u32 %v267, 16
      %v391 = vrot.slane %v389, 5
      %v392 = vor.u32 %v388, %v391
      %v393 = vrot.slane %v392, 4
      %v395 = vshll.u32 %v268, 16
      %v397 = vrot.slane %v395, 5
      %v398 = vsel %vm288, %v393, %v397
      %v399 = vshrl.u32 %v268, 16
      %v401 = vrot.slane %v399, 4
      %v402 = vor.u32 %v401, %v397
      %v403 = vrot.slane %v402, 4
      %v405 = vshll.u32 %v269, 16
      %v407 = vrot.slane %v405, 5
      %v408 = vsel %vm288, %v403, %v407
      %v410 = vshrl.u32 %v270, 16
      %v412 = vrot.slane %v410, 4
      %v413 = vshll.u32 %v270, 16
      %v415 = vrot.slane %v413, 5
      %v416 = vor.u32 %v412, %v415
      %v417 = vrot.slane %v416, 4
      %v419 = vshll.u32 %v271, 16
      %v421 = vrot.slane %v419, 5
      %v422 = vsel %vm288, %v417, %v421
      %v423 = vshrl.u32 %v271, 16
      %v425 = vrot.slane %v423, 4
      %v426 = vor.u32 %v425, %v421
      %v427 = vrot.slane %v426, 4
      %v429 = vshll.u32 %v272, 16
      %v431 = vrot.slane %v429, 5
      %v432 = vsel %vm288, %v427, %v431
      %v434 = vshrl.u32 %v273, 16
      %v436 = vrot.slane %v434, 4
      %v437 = vshll.u32 %v273, 16
      %v439 = vrot.slane %v437, 5
      %v440 = vor.u32 %v436, %v439
      %v441 = vrot.slane %v440, 4
      %v443 = vshll.u32 %v274, 16
      %v445 = vrot.slane %v443, 5
      %v446 = vsel %vm288, %v441, %v445
      %v447 = vshrl.u32 %v274, 16
      %v449 = vrot.slane %v447, 4
      %v450 = vor.u32 %v449, %v445
      %v451 = vrot.slane %v450, 4
      %v453 = vshll.u32 %v275, 16
      %v455 = vrot.slane %v453, 5
      %v456 = vsel %vm288, %v451, %v455
      %v458 = vshrl.u32 %v276, 16
      %v460 = vrot.slane %v458, 4
      %v461 = vshll.u32 %v276, 16
      %v463 = vrot.slane %v461, 5
      %v464 = vor.u32 %v460, %v463
      %v465 = vrot.slane %v464, 4
      %v467 = vshll.u32 %v277, 16
      %v469 = vrot.slane %v467, 5
      %v470 = vsel %vm288, %v465, %v469
      %v471 = vshrl.u32 %v277, 16
      %v473 = vrot.slane %v471, 4
      %v474 = vor.u32 %v473, %v469
      %v475 = vrot.slane %v474, 4
      %v477 = vshll.u32 %v278, 16
      %v479 = vrot.slane %v477, 5
      %v480 = vsel %vm288, %v475, %v479
      %s481 = scalar_lea.vmem %s1, 2
      %v482 = vld [vmem:[%s481] sm:$0x3]
      %v483 = vunpack.c.l.b16 %v302
      %v484 = vunpack.c.l.b16 %v312
      %v485 = vunpack.c.l.b16 %v326
      %v486 = vunpack.c.l.b16 %v336
      %v487 = vunpack.c.l.b16 %v350
      %v488 = vunpack.c.l.b16 %v360
      %v489 = vunpack.c.l.b16 %v374
      %v490 = vunpack.c.l.b16 %v384
      %v491 = vunpack.c.l.b16 %v398
      %v492 = vunpack.c.l.b16 %v408
      %v493 = vunpack.c.l.b16 %v422
      %v494 = vunpack.c.l.b16 %v432
      %v495 = vunpack.c.l.b16 %v446
      %v496 = vunpack.c.l.b16 %v456
      %v497 = vunpack.c.l.b16 %v470
      %v498 = vunpack.c.l.b16 %v480
      %v499 = vpack.c.b16 %v484, %v483
      %v500 = vpack.c.b16 %v486, %v485
      %v501 = vpack.c.b16 %v488, %v487
      %v502 = vpack.c.b16 %v490, %v489
      %v503 = vpack.c.b16 %v492, %v491
      %v504 = vpack.c.b16 %v494, %v493
      %v505 = vpack.c.b16 %v496, %v495
      %v506 = vpack.c.b16 %v498, %v497
      %vm507 = vcmask 31744
      %v509 = vsel %vm507, %v499, 0
      %v512 = vsel %vm507, %v500, 0
      %v515 = vsel %vm507, %v501, 0
      %v518 = vsel %vm507, %v502, 0
      %v521 = vsel %vm507, %v503, 0
      %v524 = vsel %vm507, %v504, 0
      %v527 = vsel %vm507, %v505, 0
      %v530 = vsel %vm507, %v506, 0
      %vm532 = vcmask 1041408
      %v534 = vsel %vm532, %v482, 0
      %536 = vmatprep.subr.bf16.mxu0 0
      %537 = vmatpush1.bf16.msra.mxu0 0
      %538 = vmatprep.subr.bf16.mxu0 0
      %539 = vmatpush1.bf16.msra.mxu0 0
      %540 = vmatprep.subr.bf16.mxu0 0
      %541 = vmatpush1.bf16.msra.mxu0 0
      %542 = vmatprep.subr.bf16.mxu0 0
      %543 = vmatpush1.bf16.msra.mxu0 0
      %544 = vmatprep.subr.bf16.mxu0 0
      %545 = vmatpush1.bf16.msra.mxu0 0
      %546 = vmatprep.subr.bf16.mxu0 0
      %547 = vmatpush1.bf16.msra.mxu0 0
      %548 = vmatprep.subr.bf16.mxu0 0
      %549 = vmatpush1.bf16.msra.mxu0 0
      %550 = vmatprep.subr.bf16.mxu0 0
      %551 = vmatpush1.bf16.msra.mxu0 %v534
      %552 = vmatprep.subr.bf16.mxu0 0
      %553 = vmatpush2.bf16.msra.mxu0 0
      %554 = vmatprep.subr.bf16.mxu0 0
      %555 = vmatpush2.bf16.msra.mxu0 0
      %556 = vmatprep.subr.bf16.mxu0 0
      %557 = vmatpush2.bf16.msra.mxu0 0
      %558 = vmatprep.subr.bf16.mxu0 0
      %559 = vmatpush2.bf16.msra.mxu0 0
      %560 = vmatprep.subr.bf16.mxu0 0
      %561 = vmatpush2.bf16.msra.mxu0 0
      %562 = vmatprep.subr.bf16.mxu0 0
      %563 = vmatpush2.bf16.msra.mxu0 0
      %564 = vmatprep.subr.bf16.mxu0 0
      %565 = vmatpush2.bf16.msra.mxu0 0
      %566 = vmatprep.subr.bf16.mxu0 0
      %567 = vmatpush2.bf16.msra.mxu0 0
      %568 = vmatprep.mubr.bf16.mxu0 0
      %569 = vmatmul.mubr.bf16.gmra.mxu0 %v509
      %v570 = vpop.f32.mrf.mxu0
      %v571 = vadd.f32 0.0, %v570
      %v572 = vpop.f32.mrf.mxu0
      %v573 = vpop.f32.mrf.mxu0
      %v574 = vadd.f32 0.0, %v573
      %v575 = vpop.f32.mrf.mxu0
      %576 = vmatprep.mubr.bf16.mxu0 0
      %577 = vmatmul.mubr.bf16.gmra.mxu0 %v512
      %v578 = vpop.f32.mrf.mxu0
      %v579 = vadd.f32 0.0, %v578
      %v580 = vpop.f32.mrf.mxu0
      %v581 = vpop.f32.mrf.mxu0
      %v582 = vadd.f32 0.0, %v581
      %v583 = vpop.f32.mrf.mxu0
      %584 = vmatprep.mubr.bf16.mxu0 0
      %585 = vmatmul.mubr.bf16.gmra.mxu0 %v515
      %v586 = vpop.f32.mrf.mxu0
      %v587 = vadd.f32 0.0, %v586
      %v588 = vpop.f32.mrf.mxu0
      %v589 = vpop.f32.mrf.mxu0
      %v590 = vadd.f32 0.0, %v589
      %v591 = vpop.f32.mrf.mxu0
      %592 = vmatprep.mubr.bf16.mxu0 0
      %593 = vmatmul.mubr.bf16.gmra.mxu0 %v518
      %v594 = vpop.f32.mrf.mxu0
      %v595 = vadd.f32 0.0, %v594
      %v596 = vpop.f32.mrf.mxu0
      %v597 = vpop.f32.mrf.mxu0
      %v598 = vadd.f32 0.0, %v597
      %v599 = vpop.f32.mrf.mxu0
      %600 = vmatprep.mubr.bf16.mxu0 0
      %601 = vmatmul.mubr.bf16.gmra.mxu0 %v521
      %v602 = vpop.f32.mrf.mxu0
      %v603 = vadd.f32 0.0, %v602
      %v604 = vpop.f32.mrf.mxu0
      %v605 = vpop.f32.mrf.mxu0
      %v606 = vadd.f32 0.0, %v605
      %v607 = vpop.f32.mrf.mxu0
      %608 = vmatprep.mubr.bf16.mxu0 0
      %609 = vmatmul.mubr.bf16.gmra.mxu0 %v524
      %v610 = vpop.f32.mrf.mxu0
      %v611 = vadd.f32 0.0, %v610
      %v612 = vpop.f32.mrf.mxu0
      %v613 = vpop.f32.mrf.mxu0
      %v614 = vadd.f32 0.0, %v613
      %v615 = vpop.f32.mrf.mxu0
      %616 = vmatprep.mubr.bf16.mxu0 0
      %617 = vmatmul.mubr.bf16.gmra.mxu0 %v527
      %v618 = vpop.f32.mrf.mxu0
      %v619 = vadd.f32 0.0, %v618
      %v620 = vpop.f32.mrf.mxu0
      %v621 = vpop.f32.mrf.mxu0
      %v622 = vadd.f32 0.0, %v621
      %v623 = vpop.f32.mrf.mxu0
      %624 = vmatprep.mubr.bf16.mxu0 0
      %625 = vmatmul.mubr.bf16.gmra.mxu0 %v530
      %v626 = vpop.f32.mrf.mxu0
      %v627 = vadd.f32 0.0, %v626
      %v628 = vpop.f32.mrf.mxu0
      %v629 = vpop.f32.mrf.mxu0
      %v630 = vadd.f32 0.0, %v629
      %v631 = vpop.f32.mrf.mxu0
      %632 = vdwg.mxu0
      %v649 = vunpack.c.l.b16 %v255
      %v650 = vunpack.c.l.b16 %v256
      %v651 = vunpack.c.l.b16 %v258
      %v652 = vunpack.c.l.b16 %v259
      %v653 = vunpack.c.l.b16 %v261
      %v654 = vunpack.c.l.b16 %v262
      %v655 = vunpack.c.l.b16 %v264
      %v656 = vunpack.c.l.b16 %v265
      %v657 = vunpack.c.l.b16 %v267
      %v658 = vunpack.c.l.b16 %v268
      %v659 = vunpack.c.l.b16 %v270
      %v660 = vunpack.c.l.b16 %v271
      %v661 = vunpack.c.l.b16 %v273
      %v662 = vunpack.c.l.b16 %v274
      %v663 = vunpack.c.l.b16 %v276
      %v664 = vunpack.c.l.b16 %v277
      %v665 = vpack.c.b16 %v650, %v649
      %v666 = vpack.c.b16 %v652, %v651
      %v667 = vpack.c.b16 %v654, %v653
      %v668 = vpack.c.b16 %v656, %v655
      %v669 = vpack.c.b16 %v658, %v657
      %v670 = vpack.c.b16 %v660, %v659
      %v671 = vpack.c.b16 %v662, %v661
      %v672 = vpack.c.b16 %v664, %v663
      %v674 = vsel %vm507, %v665, 0
      %v677 = vsel %vm507, %v666, 0
      %v680 = vsel %vm507, %v667, 0
      %v683 = vsel %vm507, %v668, 0
      %v686 = vsel %vm507, %v669, 0
      %v689 = vsel %vm507, %v670, 0
      %v692 = vsel %vm507, %v671, 0
      %v695 = vsel %vm507, %v672, 0
      %v698 = vsel %vm532, %v285, 0
      %700 = vmatprep.subr.bf16.mxu0 0
      %701 = vmatpush1.bf16.msra.mxu0 0
      %702 = vmatprep.subr.bf16.mxu0 0
      %703 = vmatpush1.bf16.msra.mxu0 0
      %704 = vmatprep.subr.bf16.mxu0 0
      %705 = vmatpush1.bf16.msra.mxu0 0
      %706 = vmatprep.subr.bf16.mxu0 0
      %707 = vmatpush1.bf16.msra.mxu0 0
      %708 = vmatprep.subr.bf16.mxu0 0
      %709 = vmatpush1.bf16.msra.mxu0 0
      %710 = vmatprep.subr.bf16.mxu0 0
      %711 = vmatpush1.bf16.msra.mxu0 0
      %712 = vmatprep.subr.bf16.mxu0 0
      %713 = vmatpush1.bf16.msra.mxu0 0
      %714 = vmatprep.subr.bf16.mxu0 0
      %715 = vmatpush1.bf16.msra.mxu0 %v698
      %716 = vmatprep.subr.bf16.mxu0 0
      %717 = vmatpush2.bf16.msra.mxu0 0
      %718 = vmatprep.subr.bf16.mxu0 0
      %719 = vmatpush2.bf16.msra.mxu0 0
      %720 = vmatprep.subr.bf16.mxu0 0
      %721 = vmatpush2.bf16.msra.mxu0 0
      %722 = vmatprep.subr.bf16.mxu0 0
      %723 = vmatpush2.bf16.msra.mxu0 0
      %724 = vmatprep.subr.bf16.mxu0 0
      %725 = vmatpush2.bf16.msra.mxu0 0
      %726 = vmatprep.subr.bf16.mxu0 0
      %727 = vmatpush2.bf16.msra.mxu0 0
      %728 = vmatprep.subr.bf16.mxu0 0
      %729 = vmatpush2.bf16.msra.mxu0 0
      %730 = vmatprep.subr.bf16.mxu0 0
      %731 = vmatpush2.bf16.msra.mxu0 0
      %732 = vmatprep.mubr.bf16.mxu0 0
      %733 = vmatmul.mubr.bf16.gmra.mxu0 %v674
      %v734 = vpop.f32.mrf.mxu0
      %v735 = vadd.f32 %v571, %v734
      %v736 = vpop.f32.mrf.mxu0
      %v737 = vpop.f32.mrf.mxu0
      %v738 = vadd.f32 %v574, %v737
      %v739 = vpop.f32.mrf.mxu0
      %740 = vmatprep.mubr.bf16.mxu0 0
      %741 = vmatmul.mubr.bf16.gmra.mxu0 %v677
      %v742 = vpop.f32.mrf.mxu0
      %v743 = vadd.f32 %v579, %v742
      %v744 = vpop.f32.mrf.mxu0
      %v745 = vpop.f32.mrf.mxu0
      %v746 = vadd.f32 %v582, %v745
      %v747 = vpop.f32.mrf.mxu0
      %748 = vmatprep.mubr.bf16.mxu0 0
      %749 = vmatmul.mubr.bf16.gmra.mxu0 %v680
      %v750 = vpop.f32.mrf.mxu0
      %v751 = vadd.f32 %v587, %v750
      %v752 = vpop.f32.mrf.mxu0
      %v753 = vpop.f32.mrf.mxu0
      %v754 = vadd.f32 %v590, %v753
      %v755 = vpop.f32.mrf.mxu0
      %756 = vmatprep.mubr.bf16.mxu0 0
      %757 = vmatmul.mubr.bf16.gmra.mxu0 %v683
      %v758 = vpop.f32.mrf.mxu0
      %v759 = vadd.f32 %v595, %v758
      %v760 = vpop.f32.mrf.mxu0
      %v761 = vpop.f32.mrf.mxu0
      %v762 = vadd.f32 %v598, %v761
      %v763 = vpop.f32.mrf.mxu0
      %764 = vmatprep.mubr.bf16.mxu0 0
      %765 = vmatmul.mubr.bf16.gmra.mxu0 %v686
      %v766 = vpop.f32.mrf.mxu0
      %v767 = vadd.f32 %v603, %v766
      %v768 = vpop.f32.mrf.mxu0
      %v769 = vpop.f32.mrf.mxu0
      %v770 = vadd.f32 %v606, %v769
      %v771 = vpop.f32.mrf.mxu0
      %772 = vmatprep.mubr.bf16.mxu0 0
      %773 = vmatmul.mubr.bf16.gmra.mxu0 %v689
      %v774 = vpop.f32.mrf.mxu0
      %v775 = vadd.f32 %v611, %v774
      %v776 = vpop.f32.mrf.mxu0
      %v777 = vpop.f32.mrf.mxu0
      %v778 = vadd.f32 %v614, %v777
      %v779 = vpop.f32.mrf.mxu0
      %780 = vmatprep.mubr.bf16.mxu0 0
      %781 = vmatmul.mubr.bf16.gmra.mxu0 %v692
      %v782 = vpop.f32.mrf.mxu0
      %v783 = vadd.f32 %v619, %v782
      %v784 = vpop.f32.mrf.mxu0
      %v785 = vpop.f32.mrf.mxu0
      %v786 = vadd.f32 %v622, %v785
      %v787 = vpop.f32.mrf.mxu0
      %788 = vmatprep.mubr.bf16.mxu0 0
      %789 = vmatmul.mubr.bf16.gmra.mxu0 %v695
      %v790 = vpop.f32.mrf.mxu0
      %v791 = vadd.f32 %v627, %v790
      %v792 = vpop.f32.mrf.mxu0
      %v793 = vpop.f32.mrf.mxu0
      %v794 = vadd.f32 %v630, %v793
      %v795 = vpop.f32.mrf.mxu0
      %796 = vdwg.mxu0
      %vm805 = vcmask 1042432
      %vm806 = vcmask 1046532
      %vm807 = vmor %vm805, %vm806
      %v808 = vrot.slane %v255, 5
      %v809 = vrot.slane %v808, 4
      %v810 = vrot.slane %v256, 5
      %v811 = vsel %vm807, %v809, %v810
      %v812 = vrot.slane %v810, 4
      %v813 = vrot.slane %v257, 5
      %v814 = vsel %vm807, %v812, %v813
      %v815 = vrot.slane %v258, 5
      %v816 = vrot.slane %v815, 4
      %v817 = vrot.slane %v259, 5
      %v818 = vsel %vm807, %v816, %v817
      %v819 = vrot.slane %v817, 4
      %v820 = vrot.slane %v260, 5
      %v821 = vsel %vm807, %v819, %v820
      %v822 = vrot.slane %v261, 5
      %v823 = vrot.slane %v822, 4
      %v824 = vrot.slane %v262, 5
      %v825 = vsel %vm807, %v823, %v824
      %v826 = vrot.slane %v824, 4
      %v827 = vrot.slane %v263, 5
      %v828 = vsel %vm807, %v826, %v827
      %v829 = vrot.slane %v264, 5
      %v830 = vrot.slane %v829, 4
      %v831 = vrot.slane %v265, 5
      %v832 = vsel %vm807, %v830, %v831
      %v833 = vrot.slane %v831, 4
      %v834 = vrot.slane %v266, 5
      %v835 = vsel %vm807, %v833, %v834
      %v836 = vrot.slane %v267, 5
      %v837 = vrot.slane %v836, 4
      %v838 = vrot.slane %v268, 5
      %v839 = vsel %vm807, %v837, %v838
      %v840 = vrot.slane %v838, 4
      %v841 = vrot.slane %v269, 5
      %v842 = vsel %vm807, %v840, %v841
      %v843 = vrot.slane %v270, 5
      %v844 = vrot.slane %v843, 4
      %v845 = vrot.slane %v271, 5
      %v846 = vsel %vm807, %v844, %v845
      %v847 = vrot.slane %v845, 4
      %v848 = vrot.slane %v272, 5
      %v849 = vsel %vm807, %v847, %v848
      %v850 = vrot.slane %v273, 5
      %v851 = vrot.slane %v850, 4
      %v852 = vrot.slane %v274, 5
      %v853 = vsel %vm807, %v851, %v852
      %v854 = vrot.slane %v852, 4
      %v855 = vrot.slane %v275, 5
      %v856 = vsel %vm807, %v854, %v855
      %v857 = vrot.slane %v276, 5
      %v858 = vrot.slane %v857, 4
      %v859 = vrot.slane %v277, 5
      %v860 = vsel %vm807, %v858, %v859
      %v861 = vrot.slane %v859, 4
      %v862 = vrot.slane %v278, 5
      %v863 = vsel %vm807, %v861, %v862
      %s864 = scalar_lea.vmem %s1, 4
      %v865 = vld [vmem:[%s864] sm:$0x3]
      %v866 = vunpack.c.l.b16 %v811
      %v867 = vunpack.c.l.b16 %v814
      %v868 = vunpack.c.l.b16 %v818
      %v869 = vunpack.c.l.b16 %v821
      %v870 = vunpack.c.l.b16 %v825
      %v871 = vunpack.c.l.b16 %v828
      %v872 = vunpack.c.l.b16 %v832
      %v873 = vunpack.c.l.b16 %v835
      %v874 = vunpack.c.l.b16 %v839
      %v875 = vunpack.c.l.b16 %v842
      %v876 = vunpack.c.l.b16 %v846
      %v877 = vunpack.c.l.b16 %v849
      %v878 = vunpack.c.l.b16 %v853
      %v879 = vunpack.c.l.b16 %v856
      %v880 = vunpack.c.l.b16 %v860
      %v881 = vunpack.c.l.b16 %v863
      %v882 = vpack.c.b16 %v867, %v866
      %v883 = vpack.c.b16 %v869, %v868
      %v884 = vpack.c.b16 %v871, %v870
      %v885 = vpack.c.b16 %v873, %v872
      %v886 = vpack.c.b16 %v875, %v874
      %v887 = vpack.c.b16 %v877, %v876
      %v888 = vpack.c.b16 %v879, %v878
      %v889 = vpack.c.b16 %v881, %v880
      %v891 = vsel %vm507, %v882, 0
      %v894 = vsel %vm507, %v883, 0
      %v897 = vsel %vm507, %v884, 0
      %v900 = vsel %vm507, %v885, 0
      %v903 = vsel %vm507, %v886, 0
      %v906 = vsel %vm507, %v887, 0
      %v909 = vsel %vm507, %v888, 0
      %v912 = vsel %vm507, %v889, 0
      %v915 = vsel %vm532, %v865, 0
      %917 = vmatprep.subr.bf16.mxu0 0
      %918 = vmatpush1.bf16.msra.mxu0 0
      %919 = vmatprep.subr.bf16.mxu0 0
      %920 = vmatpush1.bf16.msra.mxu0 0
      %921 = vmatprep.subr.bf16.mxu0 0
      %922 = vmatpush1.bf16.msra.mxu0 0
      %923 = vmatprep.subr.bf16.mxu0 0
      %924 = vmatpush1.bf16.msra.mxu0 0
      %925 = vmatprep.subr.bf16.mxu0 0
      %926 = vmatpush1.bf16.msra.mxu0 0
      %927 = vmatprep.subr.bf16.mxu0 0
      %928 = vmatpush1.bf16.msra.mxu0 0
      %929 = vmatprep.subr.bf16.mxu0 0
      %930 = vmatpush1.bf16.msra.mxu0 0
      %931 = vmatprep.subr.bf16.mxu0 0
      %932 = vmatpush1.bf16.msra.mxu0 %v915
      %933 = vmatprep.subr.bf16.mxu0 0
      %934 = vmatpush2.bf16.msra.mxu0 0
      %935 = vmatprep.subr.bf16.mxu0 0
      %936 = vmatpush2.bf16.msra.mxu0 0
      %937 = vmatprep.subr.bf16.mxu0 0
      %938 = vmatpush2.bf16.msra.mxu0 0
      %939 = vmatprep.subr.bf16.mxu0 0
      %940 = vmatpush2.bf16.msra.mxu0 0
      %941 = vmatprep.subr.bf16.mxu0 0
      %942 = vmatpush2.bf16.msra.mxu0 0
      %943 = vmatprep.subr.bf16.mxu0 0
      %944 = vmatpush2.bf16.msra.mxu0 0
      %945 = vmatprep.subr.bf16.mxu0 0
      %946 = vmatpush2.bf16.msra.mxu0 0
      %947 = vmatprep.subr.bf16.mxu0 0
      %948 = vmatpush2.bf16.msra.mxu0 0
      %949 = vmatprep.mubr.bf16.mxu0 0
      %950 = vmatmul.mubr.bf16.gmra.mxu0 %v891
      %v951 = vpop.f32.mrf.mxu0
      %v952 = vadd.f32 0.0, %v951
      %v953 = vpop.f32.mrf.mxu0
      %v954 = vpop.f32.mrf.mxu0
      %v955 = vadd.f32 0.0, %v954
      %v956 = vpop.f32.mrf.mxu0
      %957 = vmatprep.mubr.bf16.mxu0 0
      %958 = vmatmul.mubr.bf16.gmra.mxu0 %v894
      %v959 = vpop.f32.mrf.mxu0
      %v960 = vadd.f32 0.0, %v959
      %v961 = vpop.f32.mrf.mxu0
      %v962 = vpop.f32.mrf.mxu0
      %v963 = vadd.f32 0.0, %v962
      %v964 = vpop.f32.mrf.mxu0
      %965 = vmatprep.mubr.bf16.mxu0 0
      %966 = vmatmul.mubr.bf16.gmra.mxu0 %v897
      %v967 = vpop.f32.mrf.mxu0
      %v968 = vadd.f32 0.0, %v967
      %v969 = vpop.f32.mrf.mxu0
      %v970 = vpop.f32.mrf.mxu0
      %v971 = vadd.f32 0.0, %v970
      %v972 = vpop.f32.mrf.mxu0
      %973 = vmatprep.mubr.bf16.mxu0 0
      %974 = vmatmul.mubr.bf16.gmra.mxu0 %v900
      %v975 = vpop.f32.mrf.mxu0
      %v976 = vadd.f32 0.0, %v975
      %v977 = vpop.f32.mrf.mxu0
      %v978 = vpop.f32.mrf.mxu0
      %v979 = vadd.f32 0.0, %v978
      %v980 = vpop.f32.mrf.mxu0
      %981 = vmatprep.mubr.bf16.mxu0 0
      %982 = vmatmul.mubr.bf16.gmra.mxu0 %v903
      %v983 = vpop.f32.mrf.mxu0
      %v984 = vadd.f32 0.0, %v983
      %v985 = vpop.f32.mrf.mxu0
      %v986 = vpop.f32.mrf.mxu0
      %v987 = vadd.f32 0.0, %v986
      %v988 = vpop.f32.mrf.mxu0
      %989 = vmatprep.mubr.bf16.mxu0 0
      %990 = vmatmul.mubr.bf16.gmra.mxu0 %v906
      %v991 = vpop.f32.mrf.mxu0
      %v992 = vadd.f32 0.0, %v991
      %v993 = vpop.f32.mrf.mxu0
      %v994 = vpop.f32.mrf.mxu0
      %v995 = vadd.f32 0.0, %v994
      %v996 = vpop.f32.mrf.mxu0
      %997 = vmatprep.mubr.bf16.mxu0 0
      %998 = vmatmul.mubr.bf16.gmra.mxu0 %v909
      %v999 = vpop.f32.mrf.mxu0
      %v1000 = vadd.f32 0.0, %v999
      %v1001 = vpop.f32.mrf.mxu0
      %v1002 = vpop.f32.mrf.mxu0
      %v1003 = vadd.f32 0.0, %v1002
      %v1004 = vpop.f32.mrf.mxu0
      %1005 = vmatprep.mubr.bf16.mxu0 0
      %1006 = vmatmul.mubr.bf16.gmra.mxu0 %v912
      %v1007 = vpop.f32.mrf.mxu0
      %v1008 = vadd.f32 0.0, %v1007
      %v1009 = vpop.f32.mrf.mxu0
      %v1010 = vpop.f32.mrf.mxu0
      %v1011 = vadd.f32 0.0, %v1010
      %v1012 = vpop.f32.mrf.mxu0
      %1013 = vdwg.mxu0
      %v1014 = vadd.f32 %v735, %v952
      %v1015 = vadd.f32 %v738, %v955
      %v1016 = vadd.f32 %v743, %v960
      %v1017 = vadd.f32 %v746, %v963
      %v1018 = vadd.f32 %v751, %v968
      %v1019 = vadd.f32 %v754, %v971
      %v1020 = vadd.f32 %v759, %v976
      %v1021 = vadd.f32 %v762, %v979
      %v1022 = vadd.f32 %v767, %v984
      %v1023 = vadd.f32 %v770, %v987
      %v1024 = vadd.f32 %v775, %v992
      %v1025 = vadd.f32 %v778, %v995
      %v1026 = vadd.f32 %v783, %v1000
      %v1027 = vadd.f32 %v786, %v1003
      %v1028 = vadd.f32 %v791, %v1008
      %v1029 = vadd.f32 %v794, %v1011
      %s1030 = scalar_lea.vmem %s1, 6
      %v1031 = vld [vmem:[%s1030] sm:$0x3]
      %v1034 = vunpack.c.l.b16 %v279
      %v1035 = vunpack.c.l.b16 %v280
      %v1036 = vpack.c.b16 %v1035, %v1034
      %v1038 = vsel %vm507, %v1036, 0
      %v1041 = vsel %vm532, %v1031, 0
      %1043 = vmatprep.subr.bf16.mxu0 0
      %1044 = vmatpush1.bf16.msra.mxu0 0
      %1045 = vmatprep.subr.bf16.mxu0 0
      %1046 = vmatpush1.bf16.msra.mxu0 0
      %1047 = vmatprep.subr.bf16.mxu0 0
      %1048 = vmatpush1.bf16.msra.mxu0 0
      %1049 = vmatprep.subr.bf16.mxu0 0
      %1050 = vmatpush1.bf16.msra.mxu0 0
      %1051 = vmatprep.subr.bf16.mxu0 0
      %1052 = vmatpush1.bf16.msra.mxu0 0
      %1053 = vmatprep.subr.bf16.mxu0 0
      %1054 = vmatpush1.bf16.msra.mxu0 0
      %1055 = vmatprep.subr.bf16.mxu0 0
      %1056 = vmatpush1.bf16.msra.mxu0 0
      %1057 = vmatprep.subr.bf16.mxu0 0
      %1058 = vmatpush1.bf16.msra.mxu0 %v1041
      %1059 = vmatprep.subr.bf16.mxu0 0
      %1060 = vmatpush2.bf16.msra.mxu0 0
      %1061 = vmatprep.subr.bf16.mxu0 0
      %1062 = vmatpush2.bf16.msra.mxu0 0
      %1063 = vmatprep.subr.bf16.mxu0 0
      %1064 = vmatpush2.bf16.msra.mxu0 0
      %1065 = vmatprep.subr.bf16.mxu0 0
      %1066 = vmatpush2.bf16.msra.mxu0 0
      %1067 = vmatprep.subr.bf16.mxu0 0
      %1068 = vmatpush2.bf16.msra.mxu0 0
      %1069 = vmatprep.subr.bf16.mxu0 0
      %1070 = vmatpush2.bf16.msra.mxu0 0
      %1071 = vmatprep.subr.bf16.mxu0 0
      %1072 = vmatpush2.bf16.msra.mxu0 0
      %1073 = vmatprep.subr.bf16.mxu0 0
      %1074 = vmatpush2.bf16.msra.mxu0 0
      %1075 = vmatprep.mubr.bf16.mxu0 0
      %1076 = vmatmul.mubr.bf16.gmra.mxu0 %v677
      %v1077 = vpop.f32.mrf.mxu0
      %v1078 = vadd.f32 0.0, %v1077
      %v1079 = vpop.f32.mrf.mxu0
      %v1080 = vpop.f32.mrf.mxu0
      %v1081 = vadd.f32 0.0, %v1080
      %v1082 = vpop.f32.mrf.mxu0
      %1083 = vmatprep.mubr.bf16.mxu0 0
      %1084 = vmatmul.mubr.bf16.gmra.mxu0 %v680
      %v1085 = vpop.f32.mrf.mxu0
      %v1086 = vadd.f32 0.0, %v1085
      %v1087 = vpop.f32.mrf.mxu0
      %v1088 = vpop.f32.mrf.mxu0
      %v1089 = vadd.f32 0.0, %v1088
      %v1090 = vpop.f32.mrf.mxu0
      %1091 = vmatprep.mubr.bf16.mxu0 0
      %1092 = vmatmul.mubr.bf16.gmra.mxu0 %v683
      %v1093 = vpop.f32.mrf.mxu0
      %v1094 = vadd.f32 0.0, %v1093
      %v1095 = vpop.f32.mrf.mxu0
      %v1096 = vpop.f32.mrf.mxu0
      %v1097 = vadd.f32 0.0, %v1096
      %v1098 = vpop.f32.mrf.mxu0
      %1099 = vmatprep.mubr.bf16.mxu0 0
      %1100 = vmatmul.mubr.bf16.gmra.mxu0 %v686
      %v1101 = vpop.f32.mrf.mxu0
      %v1102 = vadd.f32 0.0, %v1101
      %v1103 = vpop.f32.mrf.mxu0
      %v1104 = vpop.f32.mrf.mxu0
      %v1105 = vadd.f32 0.0, %v1104
      %v1106 = vpop.f32.mrf.mxu0
      %1107 = vmatprep.mubr.bf16.mxu0 0
      %1108 = vmatmul.mubr.bf16.gmra.mxu0 %v689
      %v1109 = vpop.f32.mrf.mxu0
      %v1110 = vadd.f32 0.0, %v1109
      %v1111 = vpop.f32.mrf.mxu0
      %v1112 = vpop.f32.mrf.mxu0
      %v1113 = vadd.f32 0.0, %v1112
      %v1114 = vpop.f32.mrf.mxu0
      %1115 = vmatprep.mubr.bf16.mxu0 0
      %1116 = vmatmul.mubr.bf16.gmra.mxu0 %v692
      %v1117 = vpop.f32.mrf.mxu0
      %v1118 = vadd.f32 0.0, %v1117
      %v1119 = vpop.f32.mrf.mxu0
      %v1120 = vpop.f32.mrf.mxu0
      %v1121 = vadd.f32 0.0, %v1120
      %v1122 = vpop.f32.mrf.mxu0
      %1123 = vmatprep.mubr.bf16.mxu0 0
      %1124 = vmatmul.mubr.bf16.gmra.mxu0 %v695
      %v1125 = vpop.f32.mrf.mxu0
      %v1126 = vadd.f32 0.0, %v1125
      %v1127 = vpop.f32.mrf.mxu0
      %v1128 = vpop.f32.mrf.mxu0
      %v1129 = vadd.f32 0.0, %v1128
      %v1130 = vpop.f32.mrf.mxu0
      %1131 = vmatprep.mubr.bf16.mxu0 0
      %1132 = vmatmul.mubr.bf16.gmra.mxu0 %v1038
      %v1133 = vpop.f32.mrf.mxu0
      %v1134 = vadd.f32 0.0, %v1133
      %v1135 = vpop.f32.mrf.mxu0
      %v1136 = vpop.f32.mrf.mxu0
      %v1137 = vadd.f32 0.0, %v1136
      %v1138 = vpop.f32.mrf.mxu0
      %1139 = vdwg.mxu0
      %v1140 = vadd.f32 %v1014, %v1078
      %v1141 = vadd.f32 %v1015, %v1081
      %v1142 = vadd.f32 %v1016, %v1086
      %v1143 = vadd.f32 %v1017, %v1089
      %v1144 = vadd.f32 %v1018, %v1094
      %v1145 = vadd.f32 %v1019, %v1097
      %v1146 = vadd.f32 %v1020, %v1102
      %v1147 = vadd.f32 %v1021, %v1105
      %v1148 = vadd.f32 %v1022, %v1110
      %v1149 = vadd.f32 %v1023, %v1113
      %v1150 = vadd.f32 %v1024, %v1118
      %v1151 = vadd.f32 %v1025, %v1121
      %v1152 = vadd.f32 %v1026, %v1126
      %v1153 = vadd.f32 %v1027, %v1129
      %v1154 = vadd.f32 %v1028, %v1134
      %v1155 = vadd.f32 %v1029, %v1137
      %v1157 = vshrl.u32 %v279, 16
      %v1159 = vrot.slane %v1157, 4
      %v1160 = vshll.u32 %v279, 16
      %v1162 = vrot.slane %v1160, 5
      %v1163 = vor.u32 %v1159, %v1162
      %v1164 = vrot.slane %v1163, 4
      %v1166 = vshll.u32 %v280, 16
      %v1168 = vrot.slane %v1166, 5
      %v1169 = vsel %vm288, %v1164, %v1168
      %v1170 = vshrl.u32 %v280, 16
      %v1172 = vrot.slane %v1170, 4
      %v1173 = vor.u32 %v1172, %v1168
      %v1174 = vrot.slane %v1173, 4
      %v1176 = vshll.u32 %v281, 16
      %v1178 = vrot.slane %v1176, 5
      %v1179 = vsel %vm288, %v1174, %v1178
      %s1180 = scalar_lea.vmem %s1, 8
      %v1181 = vld [vmem:[%s1180] sm:$0x3]
      %v1182 = vunpack.c.l.b16 %v1169
      %v1183 = vunpack.c.l.b16 %v1179
      %v1184 = vpack.c.b16 %v1183, %v1182
      %v1186 = vsel %vm507, %v1184, 0
      %v1189 = vsel %vm532, %v1181, 0
      %1191 = vmatprep.subr.bf16.mxu0 0
      %1192 = vmatpush1.bf16.msra.mxu0 0
      %1193 = vmatprep.subr.bf16.mxu0 0
      %1194 = vmatpush1.bf16.msra.mxu0 0
      %1195 = vmatprep.subr.bf16.mxu0 0
      %1196 = vmatpush1.bf16.msra.mxu0 0
      %1197 = vmatprep.subr.bf16.mxu0 0
      %1198 = vmatpush1.bf16.msra.mxu0 0
      %1199 = vmatprep.subr.bf16.mxu0 0
      %1200 = vmatpush1.bf16.msra.mxu0 0
      %1201 = vmatprep.subr.bf16.mxu0 0
      %1202 = vmatpush1.bf16.msra.mxu0 0
      %1203 = vmatprep.subr.bf16.mxu0 0
      %1204 = vmatpush1.bf16.msra.mxu0 0
      %1205 = vmatprep.subr.bf16.mxu0 0
      %1206 = vmatpush1.bf16.msra.mxu0 %v1189
      %1207 = vmatprep.subr.bf16.mxu0 0
      %1208 = vmatpush2.bf16.msra.mxu0 0
      %1209 = vmatprep.subr.bf16.mxu0 0
      %1210 = vmatpush2.bf16.msra.mxu0 0
      %1211 = vmatprep.subr.bf16.mxu0 0
      %1212 = vmatpush2.bf16.msra.mxu0 0
      %1213 = vmatprep.subr.bf16.mxu0 0
      %1214 = vmatpush2.bf16.msra.mxu0 0
      %1215 = vmatprep.subr.bf16.mxu0 0
      %1216 = vmatpush2.bf16.msra.mxu0 0
      %1217 = vmatprep.subr.bf16.mxu0 0
      %1218 = vmatpush2.bf16.msra.mxu0 0
      %1219 = vmatprep.subr.bf16.mxu0 0
      %1220 = vmatpush2.bf16.msra.mxu0 0
      %1221 = vmatprep.subr.bf16.mxu0 0
      %1222 = vmatpush2.bf16.msra.mxu0 0
      %1223 = vmatprep.mubr.bf16.mxu0 0
      %1224 = vmatmul.mubr.bf16.gmra.mxu0 %v512
      %v1225 = vpop.f32.mrf.mxu0
      %v1226 = vadd.f32 0.0, %v1225
      %v1227 = vpop.f32.mrf.mxu0
      %v1228 = vpop.f32.mrf.mxu0
      %v1229 = vadd.f32 0.0, %v1228
      %v1230 = vpop.f32.mrf.mxu0
      %1231 = vmatprep.mubr.bf16.mxu0 0
      %1232 = vmatmul.mubr.bf16.gmra.mxu0 %v515
      %v1233 = vpop.f32.mrf.mxu0
      %v1234 = vadd.f32 0.0, %v1233
      %v1235 = vpop.f32.mrf.mxu0
      %v1236 = vpop.f32.mrf.mxu0
      %v1237 = vadd.f32 0.0, %v1236
      %v1238 = vpop.f32.mrf.mxu0
      %1239 = vmatprep.mubr.bf16.mxu0 0
      %1240 = vmatmul.mubr.bf16.gmra.mxu0 %v518
      %v1241 = vpop.f32.mrf.mxu0
      %v1242 = vadd.f32 0.0, %v1241
      %v1243 = vpop.f32.mrf.mxu0
      %v1244 = vpop.f32.mrf.mxu0
      %v1245 = vadd.f32 0.0, %v1244
      %v1246 = vpop.f32.mrf.mxu0
      %1247 = vmatprep.mubr.bf16.mxu0 0
      %1248 = vmatmul.mubr.bf16.gmra.mxu0 %v521
      %v1249 = vpop.f32.mrf.mxu0
      %v1250 = vadd.f32 0.0, %v1249
      %v1251 = vpop.f32.mrf.mxu0
      %v1252 = vpop.f32.mrf.mxu0
      %v1253 = vadd.f32 0.0, %v1252
      %v1254 = vpop.f32.mrf.mxu0
      %1255 = vmatprep.mubr.bf16.mxu0 0
      %1256 = vmatmul.mubr.bf16.gmra.mxu0 %v524
      %v1257 = vpop.f32.mrf.mxu0
      %v1258 = vadd.f32 0.0, %v1257
      %v1259 = vpop.f32.mrf.mxu0
      %v1260 = vpop.f32.mrf.mxu0
      %v1261 = vadd.f32 0.0, %v1260
      %v1262 = vpop.f32.mrf.mxu0
      %1263 = vmatprep.mubr.bf16.mxu0 0
      %1264 = vmatmul.mubr.bf16.gmra.mxu0 %v527
      %v1265 = vpop.f32.mrf.mxu0
      %v1266 = vadd.f32 0.0, %v1265
      %v1267 = vpop.f32.mrf.mxu0
      %v1268 = vpop.f32.mrf.mxu0
      %v1269 = vadd.f32 0.0, %v1268
      %v1270 = vpop.f32.mrf.mxu0
      %1271 = vmatprep.mubr.bf16.mxu0 0
      %1272 = vmatmul.mubr.bf16.gmra.mxu0 %v530
      %v1273 = vpop.f32.mrf.mxu0
      %v1274 = vadd.f32 0.0, %v1273
      %v1275 = vpop.f32.mrf.mxu0
      %v1276 = vpop.f32.mrf.mxu0
      %v1277 = vadd.f32 0.0, %v1276
      %v1278 = vpop.f32.mrf.mxu0
      %1279 = vmatprep.mubr.bf16.mxu0 0
      %1280 = vmatmul.mubr.bf16.gmra.mxu0 %v1186
      %v1281 = vpop.f32.mrf.mxu0
      %v1282 = vadd.f32 0.0, %v1281
      %v1283 = vpop.f32.mrf.mxu0
      %v1284 = vpop.f32.mrf.mxu0
      %v1285 = vadd.f32 0.0, %v1284
      %v1286 = vpop.f32.mrf.mxu0
      %1287 = vdwg.mxu0
      %v1288 = vadd.f32 %v1140, %v1226
      %v1289 = vadd.f32 %v1141, %v1229
      %v1290 = vadd.f32 %v1142, %v1234
      %v1291 = vadd.f32 %v1143, %v1237
      %v1292 = vadd.f32 %v1144, %v1242
      %v1293 = vadd.f32 %v1145, %v1245
      %v1294 = vadd.f32 %v1146, %v1250
      %v1295 = vadd.f32 %v1147, %v1253
      %v1296 = vadd.f32 %v1148, %v1258
      %v1297 = vadd.f32 %v1149, %v1261
      %v1298 = vadd.f32 %v1150, %v1266
      %v1299 = vadd.f32 %v1151, %v1269
      %v1300 = vadd.f32 %v1152, %v1274
      %v1301 = vadd.f32 %v1153, %v1277
      %v1302 = vadd.f32 %v1154, %v1282
      %v1303 = vadd.f32 %v1155, %v1285
      %v1305 = vrot.slane %v279, 5
      %v1306 = vrot.slane %v1305, 4
      %v1307 = vrot.slane %v280, 5
      %v1308 = vsel %vm807, %v1306, %v1307
      %v1309 = vrot.slane %v1307, 4
      %v1310 = vrot.slane %v281, 5
      %v1311 = vsel %vm807, %v1309, %v1310
      %s1312 = scalar_lea.vmem %s1, 10
      %v1313 = vld [vmem:[%s1312] sm:$0x3]
      %v1314 = vunpack.c.l.b16 %v1308
      %v1315 = vunpack.c.l.b16 %v1311
      %v1316 = vpack.c.b16 %v1315, %v1314
      %v1318 = vsel %vm507, %v1316, 0
      %v1321 = vsel %vm532, %v1313, 0
      %1323 = vmatprep.subr.bf16.mxu0 0
      %1324 = vmatpush1.bf16.msra.mxu0 0
      %1325 = vmatprep.subr.bf16.mxu0 0
      %1326 = vmatpush1.bf16.msra.mxu0 0
      %1327 = vmatprep.subr.bf16.mxu0 0
      %1328 = vmatpush1.bf16.msra.mxu0 0
      %1329 = vmatprep.subr.bf16.mxu0 0
      %1330 = vmatpush1.bf16.msra.mxu0 0
      %1331 = vmatprep.subr.bf16.mxu0 0
      %1332 = vmatpush1.bf16.msra.mxu0 0
      %1333 = vmatprep.subr.bf16.mxu0 0
      %1334 = vmatpush1.bf16.msra.mxu0 0
      %1335 = vmatprep.subr.bf16.mxu0 0
      %1336 = vmatpush1.bf16.msra.mxu0 0
      %1337 = vmatprep.subr.bf16.mxu0 0
      %1338 = vmatpush1.bf16.msra.mxu0 %v1321
      %1339 = vmatprep.subr.bf16.mxu0 0
      %1340 = vmatpush2.bf16.msra.mxu0 0
      %1341 = vmatprep.subr.bf16.mxu0 0
      %1342 = vmatpush2.bf16.msra.mxu0 0
      %1343 = vmatprep.subr.bf16.mxu0 0
      %1344 = vmatpush2.bf16.msra.mxu0 0
      %1345 = vmatprep.subr.bf16.mxu0 0
      %1346 = vmatpush2.bf16.msra.mxu0 0
      %1347 = vmatprep.subr.bf16.mxu0 0
      %1348 = vmatpush2.bf16.msra.mxu0 0
      %1349 = vmatprep.subr.bf16.mxu0 0
      %1350 = vmatpush2.bf16.msra.mxu0 0
      %1351 = vmatprep.subr.bf16.mxu0 0
      %1352 = vmatpush2.bf16.msra.mxu0 0
      %1353 = vmatprep.subr.bf16.mxu0 0
      %1354 = vmatpush2.bf16.msra.mxu0 0
      %1355 = vmatprep.mubr.bf16.mxu0 0
      %1356 = vmatmul.mubr.bf16.gmra.mxu0 %v894
      %v1357 = vpop.f32.mrf.mxu0
      %v1358 = vadd.f32 0.0, %v1357
      %v1359 = vpop.f32.mrf.mxu0
      %v1360 = vpop.f32.mrf.mxu0
      %v1361 = vadd.f32 0.0, %v1360
      %v1362 = vpop.f32.mrf.mxu0
      %1363 = vmatprep.mubr.bf16.mxu0 0
      %1364 = vmatmul.mubr.bf16.gmra.mxu0 %v897
      %v1365 = vpop.f32.mrf.mxu0
      %v1366 = vadd.f32 0.0, %v1365
      %v1367 = vpop.f32.mrf.mxu0
      %v1368 = vpop.f32.mrf.mxu0
      %v1369 = vadd.f32 0.0, %v1368
      %v1370 = vpop.f32.mrf.mxu0
      %1371 = vmatprep.mubr.bf16.mxu0 0
      %1372 = vmatmul.mubr.bf16.gmra.mxu0 %v900
      %v1373 = vpop.f32.mrf.mxu0
      %v1374 = vadd.f32 0.0, %v1373
      %v1375 = vpop.f32.mrf.mxu0
      %v1376 = vpop.f32.mrf.mxu0
      %v1377 = vadd.f32 0.0, %v1376
      %v1378 = vpop.f32.mrf.mxu0
      %1379 = vmatprep.mubr.bf16.mxu0 0
      %1380 = vmatmul.mubr.bf16.gmra.mxu0 %v903
      %v1381 = vpop.f32.mrf.mxu0
      %v1382 = vadd.f32 0.0, %v1381
      %v1383 = vpop.f32.mrf.mxu0
      %v1384 = vpop.f32.mrf.mxu0
      %v1385 = vadd.f32 0.0, %v1384
      %v1386 = vpop.f32.mrf.mxu0
      %1387 = vmatprep.mubr.bf16.mxu0 0
      %1388 = vmatmul.mubr.bf16.gmra.mxu0 %v906
      %v1389 = vpop.f32.mrf.mxu0
      %v1390 = vadd.f32 0.0, %v1389
      %v1391 = vpop.f32.mrf.mxu0
      %v1392 = vpop.f32.mrf.mxu0
      %v1393 = vadd.f32 0.0, %v1392
      %v1394 = vpop.f32.mrf.mxu0
      %1395 = vmatprep.mubr.bf16.mxu0 0
      %1396 = vmatmul.mubr.bf16.gmra.mxu0 %v909
      %v1397 = vpop.f32.mrf.mxu0
      %v1398 = vadd.f32 0.0, %v1397
      %v1399 = vpop.f32.mrf.mxu0
      %v1400 = vpop.f32.mrf.mxu0
      %v1401 = vadd.f32 0.0, %v1400
      %v1402 = vpop.f32.mrf.mxu0
      %1403 = vmatprep.mubr.bf16.mxu0 0
      %1404 = vmatmul.mubr.bf16.gmra.mxu0 %v912
      %v1405 = vpop.f32.mrf.mxu0
      %v1406 = vadd.f32 0.0, %v1405
      %v1407 = vpop.f32.mrf.mxu0
      %v1408 = vpop.f32.mrf.mxu0
      %v1409 = vadd.f32 0.0, %v1408
      %v1410 = vpop.f32.mrf.mxu0
      %1411 = vmatprep.mubr.bf16.mxu0 0
      %1412 = vmatmul.mubr.bf16.gmra.mxu0 %v1318
      %v1413 = vpop.f32.mrf.mxu0
      %v1414 = vadd.f32 0.0, %v1413
      %v1415 = vpop.f32.mrf.mxu0
      %v1416 = vpop.f32.mrf.mxu0
      %v1417 = vadd.f32 0.0, %v1416
      %v1418 = vpop.f32.mrf.mxu0
      %1419 = vdwg.mxu0
      %v1420 = vadd.f32 %v1288, %v1358
      %v1421 = vadd.f32 %v1289, %v1361
      %v1422 = vadd.f32 %v1290, %v1366
      %v1423 = vadd.f32 %v1291, %v1369
      %v1424 = vadd.f32 %v1292, %v1374
      %v1425 = vadd.f32 %v1293, %v1377
      %v1426 = vadd.f32 %v1294, %v1382
      %v1427 = vadd.f32 %v1295, %v1385
      %v1428 = vadd.f32 %v1296, %v1390
      %v1429 = vadd.f32 %v1297, %v1393
      %v1430 = vadd.f32 %v1298, %v1398
      %v1431 = vadd.f32 %v1299, %v1401
      %v1432 = vadd.f32 %v1300, %v1406
      %v1433 = vadd.f32 %v1301, %v1409
      %v1434 = vadd.f32 %v1302, %v1414
      %v1435 = vadd.f32 %v1303, %v1417
      %s1436 = scalar_lea.vmem %s1, 12
      %v1437 = vld [vmem:[%s1436] sm:$0x3]
      %v1440 = vunpack.c.l.b16 %v282
      %v1441 = vunpack.c.l.b16 %v283
      %v1442 = vpack.c.b16 %v1441, %v1440
      %v1444 = vsel %vm507, %v1442, 0
      %v1447 = vsel %vm532, %v1437, 0
      %1449 = vmatprep.subr.bf16.mxu0 0
      %1450 = vmatpush1.bf16.msra.mxu0 0
      %1451 = vmatprep.subr.bf16.mxu0 0
      %1452 = vmatpush1.bf16.msra.mxu0 0
      %1453 = vmatprep.subr.bf16.mxu0 0
      %1454 = vmatpush1.bf16.msra.mxu0 0
      %1455 = vmatprep.subr.bf16.mxu0 0
      %1456 = vmatpush1.bf16.msra.mxu0 0
      %1457 = vmatprep.subr.bf16.mxu0 0
      %1458 = vmatpush1.bf16.msra.mxu0 0
      %1459 = vmatprep.subr.bf16.mxu0 0
      %1460 = vmatpush1.bf16.msra.mxu0 0
      %1461 = vmatprep.subr.bf16.mxu0 0
      %1462 = vmatpush1.bf16.msra.mxu0 0
      %1463 = vmatprep.subr.bf16.mxu0 0
      %1464 = vmatpush1.bf16.msra.mxu0 %v1447
      %1465 = vmatprep.subr.bf16.mxu0 0
      %1466 = vmatpush2.bf16.msra.mxu0 0
      %1467 = vmatprep.subr.bf16.mxu0 0
      %1468 = vmatpush2.bf16.msra.mxu0 0
      %1469 = vmatprep.subr.bf16.mxu0 0
      %1470 = vmatpush2.bf16.msra.mxu0 0
      %1471 = vmatprep.subr.bf16.mxu0 0
      %1472 = vmatpush2.bf16.msra.mxu0 0
      %1473 = vmatprep.subr.bf16.mxu0 0
      %1474 = vmatpush2.bf16.msra.mxu0 0
      %1475 = vmatprep.subr.bf16.mxu0 0
      %1476 = vmatpush2.bf16.msra.mxu0 0
      %1477 = vmatprep.subr.bf16.mxu0 0
      %1478 = vmatpush2.bf16.msra.mxu0 0
      %1479 = vmatprep.subr.bf16.mxu0 0
      %1480 = vmatpush2.bf16.msra.mxu0 0
      %1481 = vmatprep.mubr.bf16.mxu0 0
      %1482 = vmatmul.mubr.bf16.gmra.mxu0 %v680
      %v1483 = vpop.f32.mrf.mxu0
      %v1484 = vadd.f32 0.0, %v1483
      %v1485 = vpop.f32.mrf.mxu0
      %v1486 = vpop.f32.mrf.mxu0
      %v1487 = vadd.f32 0.0, %v1486
      %v1488 = vpop.f32.mrf.mxu0
      %1489 = vmatprep.mubr.bf16.mxu0 0
      %1490 = vmatmul.mubr.bf16.gmra.mxu0 %v683
      %v1491 = vpop.f32.mrf.mxu0
      %v1492 = vadd.f32 0.0, %v1491
      %v1493 = vpop.f32.mrf.mxu0
      %v1494 = vpop.f32.mrf.mxu0
      %v1495 = vadd.f32 0.0, %v1494
      %v1496 = vpop.f32.mrf.mxu0
      %1497 = vmatprep.mubr.bf16.mxu0 0
      %1498 = vmatmul.mubr.bf16.gmra.mxu0 %v686
      %v1499 = vpop.f32.mrf.mxu0
      %v1500 = vadd.f32 0.0, %v1499
      %v1501 = vpop.f32.mrf.mxu0
      %v1502 = vpop.f32.mrf.mxu0
      %v1503 = vadd.f32 0.0, %v1502
      %v1504 = vpop.f32.mrf.mxu0
      %1505 = vmatprep.mubr.bf16.mxu0 0
      %1506 = vmatmul.mubr.bf16.gmra.mxu0 %v689
      %v1507 = vpop.f32.mrf.mxu0
      %v1508 = vadd.f32 0.0, %v1507
      %v1509 = vpop.f32.mrf.mxu0
      %v1510 = vpop.f32.mrf.mxu0
      %v1511 = vadd.f32 0.0, %v1510
      %v1512 = vpop.f32.mrf.mxu0
      %1513 = vmatprep.mubr.bf16.mxu0 0
      %1514 = vmatmul.mubr.bf16.gmra.mxu0 %v692
      %v1515 = vpop.f32.mrf.mxu0
      %v1516 = vadd.f32 0.0, %v1515
      %v1517 = vpop.f32.mrf.mxu0
      %v1518 = vpop.f32.mrf.mxu0
      %v1519 = vadd.f32 0.0, %v1518
      %v1520 = vpop.f32.mrf.mxu0
      %1521 = vmatprep.mubr.bf16.mxu0 0
      %1522 = vmatmul.mubr.bf16.gmra.mxu0 %v695
      %v1523 = vpop.f32.mrf.mxu0
      %v1524 = vadd.f32 0.0, %v1523
      %v1525 = vpop.f32.mrf.mxu0
      %v1526 = vpop.f32.mrf.mxu0
      %v1527 = vadd.f32 0.0, %v1526
      %v1528 = vpop.f32.mrf.mxu0
      %1529 = vmatprep.mubr.bf16.mxu0 0
      %1530 = vmatmul.mubr.bf16.gmra.mxu0 %v1038
      %v1531 = vpop.f32.mrf.mxu0
      %v1532 = vadd.f32 0.0, %v1531
      %v1533 = vpop.f32.mrf.mxu0
      %v1534 = vpop.f32.mrf.mxu0
      %v1535 = vadd.f32 0.0, %v1534
      %v1536 = vpop.f32.mrf.mxu0
      %1537 = vmatprep.mubr.bf16.mxu0 0
      %1538 = vmatmul.mubr.bf16.gmra.mxu0 %v1444
      %v1539 = vpop.f32.mrf.mxu0
      %v1540 = vadd.f32 0.0, %v1539
      %v1541 = vpop.f32.mrf.mxu0
      %v1542 = vpop.f32.mrf.mxu0
      %v1543 = vadd.f32 0.0, %v1542
      %v1544 = vpop.f32.mrf.mxu0
      %1545 = vdwg.mxu0
      %v1546 = vadd.f32 %v1420, %v1484
      %v1547 = vadd.f32 %v1421, %v1487
      %v1548 = vadd.f32 %v1422, %v1492
      %v1549 = vadd.f32 %v1423, %v1495
      %v1550 = vadd.f32 %v1424, %v1500
      %v1551 = vadd.f32 %v1425, %v1503
      %v1552 = vadd.f32 %v1426, %v1508
      %v1553 = vadd.f32 %v1427, %v1511
      %v1554 = vadd.f32 %v1428, %v1516
      %v1555 = vadd.f32 %v1429, %v1519
      %v1556 = vadd.f32 %v1430, %v1524
      %v1557 = vadd.f32 %v1431, %v1527
      %v1558 = vadd.f32 %v1432, %v1532
      %v1559 = vadd.f32 %v1433, %v1535
      %v1560 = vadd.f32 %v1434, %v1540
      %v1561 = vadd.f32 %v1435, %v1543
      %v1563 = vshrl.u32 %v282, 16
      %v1565 = vrot.slane %v1563, 4
      %v1566 = vshll.u32 %v282, 16
      %v1568 = vrot.slane %v1566, 5
      %v1569 = vor.u32 %v1565, %v1568
      %v1570 = vrot.slane %v1569, 4
      %v1572 = vshll.u32 %v283, 16
      %v1574 = vrot.slane %v1572, 5
      %v1575 = vsel %vm288, %v1570, %v1574
      %v1576 = vshrl.u32 %v283, 16
      %v1578 = vrot.slane %v1576, 4
      %v1579 = vor.u32 %v1578, %v1574
      %v1580 = vrot.slane %v1579, 4
      %v1582 = vshll.u32 %v284, 16
      %v1584 = vrot.slane %v1582, 5
      %v1585 = vsel %vm288, %v1580, %v1584
      %s1586 = scalar_lea.vmem %s1, 14
      %v1587 = vld [vmem:[%s1586] sm:$0x3]
      %v1588 = vunpack.c.l.b16 %v1575
      %v1589 = vunpack.c.l.b16 %v1585
      %v1590 = vpack.c.b16 %v1589, %v1588
      %v1592 = vsel %vm507, %v1590, 0
      %v1595 = vsel %vm532, %v1587, 0
      %1597 = vmatprep.subr.bf16.mxu0 0
      %1598 = vmatpush1.bf16.msra.mxu0 0
      %1599 = vmatprep.subr.bf16.mxu0 0
      %1600 = vmatpush1.bf16.msra.mxu0 0
      %1601 = vmatprep.subr.bf16.mxu0 0
      %1602 = vmatpush1.bf16.msra.mxu0 0
      %1603 = vmatprep.subr.bf16.mxu0 0
      %1604 = vmatpush1.bf16.msra.mxu0 0
      %1605 = vmatprep.subr.bf16.mxu0 0
      %1606 = vmatpush1.bf16.msra.mxu0 0
      %1607 = vmatprep.subr.bf16.mxu0 0
      %1608 = vmatpush1.bf16.msra.mxu0 0
      %1609 = vmatprep.subr.bf16.mxu0 0
      %1610 = vmatpush1.bf16.msra.mxu0 0
      %1611 = vmatprep.subr.bf16.mxu0 0
      %1612 = vmatpush1.bf16.msra.mxu0 %v1595
      %1613 = vmatprep.subr.bf16.mxu0 0
      %1614 = vmatpush2.bf16.msra.mxu0 0
      %1615 = vmatprep.subr.bf16.mxu0 0
      %1616 = vmatpush2.bf16.msra.mxu0 0
      %1617 = vmatprep.subr.bf16.mxu0 0
      %1618 = vmatpush2.bf16.msra.mxu0 0
      %1619 = vmatprep.subr.bf16.mxu0 0
      %1620 = vmatpush2.bf16.msra.mxu0 0
      %1621 = vmatprep.subr.bf16.mxu0 0
      %1622 = vmatpush2.bf16.msra.mxu0 0
      %1623 = vmatprep.subr.bf16.mxu0 0
      %1624 = vmatpush2.bf16.msra.mxu0 0
      %1625 = vmatprep.subr.bf16.mxu0 0
      %1626 = vmatpush2.bf16.msra.mxu0 0
      %1627 = vmatprep.subr.bf16.mxu0 0
      %1628 = vmatpush2.bf16.msra.mxu0 0
      %1629 = vmatprep.mubr.bf16.mxu0 0
      %1630 = vmatmul.mubr.bf16.gmra.mxu0 %v515
      %v1631 = vpop.f32.mrf.mxu0
      %v1632 = vadd.f32 0.0, %v1631
      %v1633 = vpop.f32.mrf.mxu0
      %v1634 = vpop.f32.mrf.mxu0
      %v1635 = vadd.f32 0.0, %v1634
      %v1636 = vpop.f32.mrf.mxu0
      %1637 = vmatprep.mubr.bf16.mxu0 0
      %1638 = vmatmul.mubr.bf16.gmra.mxu0 %v518
      %v1639 = vpop.f32.mrf.mxu0
      %v1640 = vadd.f32 0.0, %v1639
      %v1641 = vpop.f32.mrf.mxu0
      %v1642 = vpop.f32.mrf.mxu0
      %v1643 = vadd.f32 0.0, %v1642
      %v1644 = vpop.f32.mrf.mxu0
      %1645 = vmatprep.mubr.bf16.mxu0 0
      %1646 = vmatmul.mubr.bf16.gmra.mxu0 %v521
      %v1647 = vpop.f32.mrf.mxu0
      %v1648 = vadd.f32 0.0, %v1647
      %v1649 = vpop.f32.mrf.mxu0
      %v1650 = vpop.f32.mrf.mxu0
      %v1651 = vadd.f32 0.0, %v1650
      %v1652 = vpop.f32.mrf.mxu0
      %1653 = vmatprep.mubr.bf16.mxu0 0
      %1654 = vmatmul.mubr.bf16.gmra.mxu0 %v524
      %v1655 = vpop.f32.mrf.mxu0
      %v1656 = vadd.f32 0.0, %v1655
      %v1657 = vpop.f32.mrf.mxu0
      %v1658 = vpop.f32.mrf.mxu0
      %v1659 = vadd.f32 0.0, %v1658
      %v1660 = vpop.f32.mrf.mxu0
      %1661 = vmatprep.mubr.bf16.mxu0 0
      %1662 = vmatmul.mubr.bf16.gmra.mxu0 %v527
      %v1663 = vpop.f32.mrf.mxu0
      %v1664 = vadd.f32 0.0, %v1663
      %v1665 = vpop.f32.mrf.mxu0
      %v1666 = vpop.f32.mrf.mxu0
      %v1667 = vadd.f32 0.0, %v1666
      %v1668 = vpop.f32.mrf.mxu0
      %1669 = vmatprep.mubr.bf16.mxu0 0
      %1670 = vmatmul.mubr.bf16.gmra.mxu0 %v530
      %v1671 = vpop.f32.mrf.mxu0
      %v1672 = vadd.f32 0.0, %v1671
      %v1673 = vpop.f32.mrf.mxu0
      %v1674 = vpop.f32.mrf.mxu0
      %v1675 = vadd.f32 0.0, %v1674
      %v1676 = vpop.f32.mrf.mxu0
      %1677 = vmatprep.mubr.bf16.mxu0 0
      %1678 = vmatmul.mubr.bf16.gmra.mxu0 %v1186
      %v1679 = vpop.f32.mrf.mxu0
      %v1680 = vadd.f32 0.0, %v1679
      %v1681 = vpop.f32.mrf.mxu0
      %v1682 = vpop.f32.mrf.mxu0
      %v1683 = vadd.f32 0.0, %v1682
      %v1684 = vpop.f32.mrf.mxu0
      %1685 = vmatprep.mubr.bf16.mxu0 0
      %1686 = vmatmul.mubr.bf16.gmra.mxu0 %v1592
      %v1687 = vpop.f32.mrf.mxu0
      %v1688 = vadd.f32 0.0, %v1687
      %v1689 = vpop.f32.mrf.mxu0
      %v1690 = vpop.f32.mrf.mxu0
      %v1691 = vadd.f32 0.0, %v1690
      %v1692 = vpop.f32.mrf.mxu0
      %1693 = vdwg.mxu0
      %v1694 = vadd.f32 %v1546, %v1632
      %v1695 = vadd.f32 %v1547, %v1635
      %v1696 = vadd.f32 %v1548, %v1640
      %v1697 = vadd.f32 %v1549, %v1643
      %v1698 = vadd.f32 %v1550, %v1648
      %v1699 = vadd.f32 %v1551, %v1651
      %v1700 = vadd.f32 %v1552, %v1656
      %v1701 = vadd.f32 %v1553, %v1659
      %v1702 = vadd.f32 %v1554, %v1664
      %v1703 = vadd.f32 %v1555, %v1667
      %v1704 = vadd.f32 %v1556, %v1672
      %v1705 = vadd.f32 %v1557, %v1675
      %v1706 = vadd.f32 %v1558, %v1680
      %v1707 = vadd.f32 %v1559, %v1683
      %v1708 = vadd.f32 %v1560, %v1688
      %v1709 = vadd.f32 %v1561, %v1691
      %v1711 = vrot.slane %v282, 5
      %v1712 = vrot.slane %v1711, 4
      %v1713 = vrot.slane %v283, 5
      %v1714 = vsel %vm807, %v1712, %v1713
      %v1715 = vrot.slane %v1713, 4
      %v1716 = vrot.slane %v284, 5
      %v1717 = vsel %vm807, %v1715, %v1716
      %s1718 = scalar_lea.vmem %s1, 16
      %v1719 = vld [vmem:[%s1718] sm:$0x3]
      %v1720 = vunpack.c.l.b16 %v1714
      %v1721 = vunpack.c.l.b16 %v1717
      %v1722 = vpack.c.b16 %v1721, %v1720
      %v1724 = vsel %vm507, %v1722, 0
      %v1727 = vsel %vm532, %v1719, 0
      %1729 = vmatprep.subr.bf16.mxu0 0
      %1730 = vmatpush1.bf16.msra.mxu0 0
      %1731 = vmatprep.subr.bf16.mxu0 0
      %1732 = vmatpush1.bf16.msra.mxu0 0
      %1733 = vmatprep.subr.bf16.mxu0 0
      %1734 = vmatpush1.bf16.msra.mxu0 0
      %1735 = vmatprep.subr.bf16.mxu0 0
      %1736 = vmatpush1.bf16.msra.mxu0 0
      %1737 = vmatprep.subr.bf16.mxu0 0
      %1738 = vmatpush1.bf16.msra.mxu0 0
      %1739 = vmatprep.subr.bf16.mxu0 0
      %1740 = vmatpush1.bf16.msra.mxu0 0
      %1741 = vmatprep.subr.bf16.mxu0 0
      %1742 = vmatpush1.bf16.msra.mxu0 0
      %1743 = vmatprep.subr.bf16.mxu0 0
      %1744 = vmatpush1.bf16.msra.mxu0 %v1727
      %1745 = vmatprep.subr.bf16.mxu0 0
      %1746 = vmatpush2.bf16.msra.mxu0 0
      %1747 = vmatprep.subr.bf16.mxu0 0
      %1748 = vmatpush2.bf16.msra.mxu0 0
      %1749 = vmatprep.subr.bf16.mxu0 0
      %1750 = vmatpush2.bf16.msra.mxu0 0
      %1751 = vmatprep.subr.bf16.mxu0 0
      %1752 = vmatpush2.bf16.msra.mxu0 0
      %1753 = vmatprep.subr.bf16.mxu0 0
      %1754 = vmatpush2.bf16.msra.mxu0 0
      %1755 = vmatprep.subr.bf16.mxu0 0
      %1756 = vmatpush2.bf16.msra.mxu0 0
      %1757 = vmatprep.subr.bf16.mxu0 0
      %1758 = vmatpush2.bf16.msra.mxu0 0
      %1759 = vmatprep.subr.bf16.mxu0 0
      %1760 = vmatpush2.bf16.msra.mxu0 0
      %1761 = vmatprep.mubr.bf16.mxu0 0
      %1762 = vmatmul.mubr.bf16.gmra.mxu0 %v897
      %v1763 = vpop.f32.mrf.mxu0
      %v1764 = vadd.f32 0.0, %v1763
      %v1765 = vpop.f32.mrf.mxu0
      %v1766 = vpop.f32.mrf.mxu0
      %v1767 = vadd.f32 0.0, %v1766
      %v1768 = vpop.f32.mrf.mxu0
      %1769 = vmatprep.mubr.bf16.mxu0 0
      %1770 = vmatmul.mubr.bf16.gmra.mxu0 %v900
      %v1771 = vpop.f32.mrf.mxu0
      %v1772 = vadd.f32 0.0, %v1771
      %v1773 = vpop.f32.mrf.mxu0
      %v1774 = vpop.f32.mrf.mxu0
      %v1775 = vadd.f32 0.0, %v1774
      %v1776 = vpop.f32.mrf.mxu0
      %1777 = vmatprep.mubr.bf16.mxu0 0
      %1778 = vmatmul.mubr.bf16.gmra.mxu0 %v903
      %v1779 = vpop.f32.mrf.mxu0
      %v1780 = vadd.f32 0.0, %v1779
      %v1781 = vpop.f32.mrf.mxu0
      %v1782 = vpop.f32.mrf.mxu0
      %v1783 = vadd.f32 0.0, %v1782
      %v1784 = vpop.f32.mrf.mxu0
      %1785 = vmatprep.mubr.bf16.mxu0 0
      %1786 = vmatmul.mubr.bf16.gmra.mxu0 %v906
      %v1787 = vpop.f32.mrf.mxu0
      %v1788 = vadd.f32 0.0, %v1787
      %v1789 = vpop.f32.mrf.mxu0
      %v1790 = vpop.f32.mrf.mxu0
      %v1791 = vadd.f32 0.0, %v1790
      %v1792 = vpop.f32.mrf.mxu0
      %1793 = vmatprep.mubr.bf16.mxu0 0
      %1794 = vmatmul.mubr.bf16.gmra.mxu0 %v909
      %v1795 = vpop.f32.mrf.mxu0
      %v1796 = vadd.f32 0.0, %v1795
      %v1797 = vpop.f32.mrf.mxu0
      %v1798 = vpop.f32.mrf.mxu0
      %v1799 = vadd.f32 0.0, %v1798
      %v1800 = vpop.f32.mrf.mxu0
      %1801 = vmatprep.mubr.bf16.mxu0 0
      %1802 = vmatmul.mubr.bf16.gmra.mxu0 %v912
      %v1803 = vpop.f32.mrf.mxu0
      %v1804 = vadd.f32 0.0, %v1803
      %v1805 = vpop.f32.mrf.mxu0
      %v1806 = vpop.f32.mrf.mxu0
      %v1807 = vadd.f32 0.0, %v1806
      %v1808 = vpop.f32.mrf.mxu0
      %1809 = vmatprep.mubr.bf16.mxu0 0
      %1810 = vmatmul.mubr.bf16.gmra.mxu0 %v1318
      %v1811 = vpop.f32.mrf.mxu0
      %v1812 = vadd.f32 0.0, %v1811
      %v1813 = vpop.f32.mrf.mxu0
      %v1814 = vpop.f32.mrf.mxu0
      %v1815 = vadd.f32 0.0, %v1814
      %v1816 = vpop.f32.mrf.mxu0
      %1817 = vmatprep.mubr.bf16.mxu0 0
      %1818 = vmatmul.mubr.bf16.gmra.mxu0 %v1724
      %v1819 = vpop.f32.mrf.mxu0
      %v1820 = vadd.f32 0.0, %v1819
      %v1821 = vpop.f32.mrf.mxu0
      %v1822 = vpop.f32.mrf.mxu0
      %v1823 = vadd.f32 0.0, %v1822
      %v1824 = vpop.f32.mrf.mxu0
      %1825 = vdwg.mxu0
      %v1826 = vadd.f32 %v1694, %v1764
      %v1827 = vadd.f32 %v1695, %v1767
      %v1828 = vadd.f32 %v1696, %v1772
      %v1829 = vadd.f32 %v1697, %v1775
      %v1830 = vadd.f32 %v1698, %v1780
      %v1831 = vadd.f32 %v1699, %v1783
      %v1832 = vadd.f32 %v1700, %v1788
      %v1833 = vadd.f32 %v1701, %v1791
      %v1834 = vadd.f32 %v1702, %v1796
      %v1835 = vadd.f32 %v1703, %v1799
      %v1836 = vadd.f32 %v1704, %v1804
      %v1837 = vadd.f32 %v1705, %v1807
      %v1838 = vadd.f32 %v1706, %v1812
      %v1839 = vadd.f32 %v1707, %v1815
      %v1840 = vadd.f32 %v1708, %v1820
      %v1841 = vadd.f32 %v1709, %v1823
      %v1842 = vld [vmem:[%s2] sm:$0x1]
      %v1844 = vlaneseq
      %v1845 = vshrl.u32 %v1844, 7
      %v1846 = vsub.s32 0, %v1845
      %v1847 = vrot.slane %v1842, %v1846
      %v1849 = vadd.f32 %v1826, %v1847
      %v1850 = vadd.f32 %v1827, %v1847
      %v1851 = vadd.f32 %v1828, %v1847
      %v1852 = vadd.f32 %v1829, %v1847
      %v1853 = vadd.f32 %v1830, %v1847
      %v1854 = vadd.f32 %v1831, %v1847
      %v1855 = vadd.f32 %v1832, %v1847
      %v1856 = vadd.f32 %v1833, %v1847
      %v1857 = vadd.f32 %v1834, %v1847
      %v1858 = vadd.f32 %v1835, %v1847
      %v1859 = vadd.f32 %v1836, %v1847
      %v1860 = vadd.f32 %v1837, %v1847
      %v1861 = vadd.f32 %v1838, %v1847
      %v1862 = vadd.f32 %v1839, %v1847
      %v1863 = vadd.f32 %v1840, %v1847
      %v1864 = vadd.f32 %v1841, %v1847
      %v1865 = vmax.f32 %v1849, 0.0
      %v1866 = vmax.f32 %v1850, 0.0
      %v1867 = vmax.f32 %v1851, 0.0
      %v1868 = vmax.f32 %v1852, 0.0
      %v1869 = vmax.f32 %v1853, 0.0
      %v1870 = vmax.f32 %v1854, 0.0
      %v1871 = vmax.f32 %v1855, 0.0
      %v1872 = vmax.f32 %v1856, 0.0
      %v1873 = vmax.f32 %v1857, 0.0
      %v1874 = vmax.f32 %v1858, 0.0
      %v1875 = vmax.f32 %v1859, 0.0
      %v1876 = vmax.f32 %v1860, 0.0
      %v1877 = vmax.f32 %v1861, 0.0
      %v1878 = vmax.f32 %v1862, 0.0
      %v1879 = vmax.f32 %v1863, 0.0
      %v1880 = vmax.f32 %v1864, 0.0
      %v1881 = vld [vmem:[#allocation2] sm:$0x1]
      %1882 = vmatprep.subr.mxu0 0.0
      %1883 = vmatpush1.msra.mxu0 %v1880
      %1884 = vmatprep.subr.mxu0 0.0
      %1885 = vmatpush1.msra.mxu0 %v1879
      %1886 = vmatprep.subr.mxu0 0.0
      %1887 = vmatpush1.msra.mxu0 %v1878
      %1888 = vmatprep.subr.mxu0 0.0
      %1889 = vmatpush1.msra.mxu0 %v1877
      %1890 = vmatprep.subr.mxu0 0.0
      %1891 = vmatpush1.msra.mxu0 %v1876
      %1892 = vmatprep.subr.mxu0 0.0
      %1893 = vmatpush1.msra.mxu0 %v1875
      %1894 = vmatprep.subr.mxu0 0.0
      %1895 = vmatpush1.msra.mxu0 %v1874
      %1896 = vmatprep.subr.mxu0 0.0
      %1897 = vmatpush1.msra.mxu0 %v1873
      %1898 = vmatprep.subr.mxu0 0.0
      %1899 = vmatpush1.msra.mxu0 %v1872
      %1900 = vmatprep.subr.mxu0 0.0
      %1901 = vmatpush1.msra.mxu0 %v1871
      %1902 = vmatprep.subr.mxu0 0.0
      %1903 = vmatpush1.msra.mxu0 %v1870
      %1904 = vmatprep.subr.mxu0 0.0
      %1905 = vmatpush1.msra.mxu0 %v1869
      %1906 = vmatprep.subr.mxu0 0.0
      %1907 = vmatpush1.msra.mxu0 %v1868
      %1908 = vmatprep.subr.mxu0 0.0
      %1909 = vmatpush1.msra.mxu0 %v1867
      %1910 = vmatprep.subr.mxu0 0.0
      %1911 = vmatpush1.msra.mxu0 %v1866
      %1912 = vmatprep.subr.mxu0 0.0
      %1913 = vmatpush1.msra.mxu0 %v1865
      %1914 = vmatprep.subr.mxu0 0.0
      %1915 = vmatpush2.msra.mxu0 0.0
      %1916 = vmatprep.subr.mxu0 0.0
      %1917 = vmatpush2.msra.mxu0 0.0
      %1918 = vmatprep.subr.mxu0 0.0
      %1919 = vmatpush2.msra.mxu0 0.0
      %1920 = vmatprep.subr.mxu0 0.0
      %1921 = vmatpush2.msra.mxu0 0.0
      %1922 = vmatprep.subr.mxu0 0.0
      %1923 = vmatpush2.msra.mxu0 0.0
      %1924 = vmatprep.subr.mxu0 0.0
      %1925 = vmatpush2.msra.mxu0 0.0
      %1926 = vmatprep.subr.mxu0 0.0
      %1927 = vmatpush2.msra.mxu0 0.0
      %1928 = vmatprep.subr.mxu0 0.0
      %1929 = vmatpush2.msra.mxu0 0.0
      %1930 = vmatprep.subr.mxu0 0.0
      %1931 = vmatpush2.msra.mxu0 0.0
      %1932 = vmatprep.subr.mxu0 0.0
      %1933 = vmatpush2.msra.mxu0 0.0
      %1934 = vmatprep.subr.mxu0 0.0
      %1935 = vmatpush2.msra.mxu0 0.0
      %1936 = vmatprep.subr.mxu0 0.0
      %1937 = vmatpush2.msra.mxu0 0.0
      %1938 = vmatprep.subr.mxu0 0.0
      %1939 = vmatpush2.msra.mxu0 0.0
      %1940 = vmatprep.subr.mxu0 0.0
      %1941 = vmatpush2.msra.mxu0 0.0
      %1942 = vmatprep.subr.mxu0 0.0
      %1943 = vmatpush2.msra.mxu0 0.0
      %1944 = vmatprep.subr.mxu0 0.0
      %1945 = vmatpush2.msra.mxu0 0.0
      %1946 = vmatprep.mubr.f32.mxu0 0.0
      %1947 = vmatmul.mubr.f32.gmra.mxu0 0.00390625
      %v1948 = vpop.f32.mrf.mxu0
      %v1949 = vadd.f32 0.0, %v1948
      %v1950 = vpop.f32.mrf.mxu0
      %1951 = vdwg.mxu0
      %v1952 = vadd.f32 %v1881, %v1949
      %1953 = vst [vmem:[#allocation2] sm:$0x1] %v1952
      %p1954 = scmp.eq.s32.totalorder %s21, 1
      // Predicated region
      $region45: #{classification_backbone_forward.1} parent=39 // pred_check
        %p1955 = pneg %p1954
      $region46: #{classification_backbone_forward.1} parent=39 // pred_check_branch
        %1957 = sbr.rel (%p1955) target = $region48
      $region47: #{classification_backbone_forward.1} parent=39 // pred_region
        %v1958 = vld [vmem:[#allocation2] sm:$0x1]
        %v1959 = vld [vmem:[%s3] sm:$0xff]
        %v1960 = vld [vmem:[%s3 + $0x8] sm:$0xff]
        %v1961 = vld [vmem:[%s3 + $0x10] sm:$0xff]
        %v1962 = vld [vmem:[%s3 + $0x18] sm:$0xff]
        %v1963 = vld [vmem:[%s3 + $0x20] sm:$0xff]
        %v1964 = vld [vmem:[%s3 + $0x28] sm:$0xff]
        %v1965 = vld [vmem:[%s3 + $0x30] sm:$0xff]
        %v1966 = vld [vmem:[%s3 + $0x38] sm:$0xff]
        %v1967 = vld [vmem:[%s3 + $0x40] sm:$0xff]
        %v1968 = vld [vmem:[%s3 + $0x48] sm:$0xff]
        %v1969 = vld [vmem:[%s3 + $0x50] sm:$0xff]
        %v1970 = vld [vmem:[%s3 + $0x58] sm:$0xff]
        %v1971 = vld [vmem:[%s3 + $0x60] sm:$0xff]
        %v1972 = vld [vmem:[%s3 + $0x68] sm:$0xff]
        %v1973 = vld [vmem:[%s3 + $0x70] sm:$0xff]
        %v1974 = vld [vmem:[%s3 + $0x78] sm:$0xff]
        %v1975 = vld [vmem:[%s3 + $0x80] sm:$0xff]
        %v1976 = vld [vmem:[%s3 + $0x88] sm:$0xff]
        %v1977 = vld [vmem:[%s3 + $0x90] sm:$0xff]
        %v1978 = vld [vmem:[%s3 + $0x98] sm:$0xff]
        %v1979 = vld [vmem:[%s3 + $0xa0] sm:$0xff]
        %v1980 = vld [vmem:[%s3 + $0xa8] sm:$0xff]
        %v1981 = vld [vmem:[%s3 + $0xb0] sm:$0xff]
        %v1982 = vld [vmem:[%s3 + $0xb8] sm:$0xff]
        %v1983 = vld [vmem:[%s3 + $0xc0] sm:$0xff]
        %v1984 = vld [vmem:[%s3 + $0xc8] sm:$0xff]
        %v1985 = vld [vmem:[%s3 + $0xd0] sm:$0xff]
        %v1986 = vld [vmem:[%s3 + $0xd8] sm:$0xff]
        %v1987 = vld [vmem:[%s3 + $0xe0] sm:$0xff]
        %v1988 = vld [vmem:[%s3 + $0xe8] sm:$0xff]
        %v1989 = vld [vmem:[%s3 + $0xf0] sm:$0xff]
        %v1990 = vld [vmem:[%s3 + $0xf8] sm:$0xff]
        %v1991 = vld [vmem:[%s3 + $0x100] sm:$0xff]
        %v1992 = vld [vmem:[%s3 + $0x108] sm:$0xff]
        %v1993 = vld [vmem:[%s3 + $0x110] sm:$0xff]
        %v1994 = vld [vmem:[%s3 + $0x118] sm:$0xff]
        %v1995 = vld [vmem:[%s3 + $0x120] sm:$0xff]
        %v1996 = vld [vmem:[%s3 + $0x128] sm:$0xff]
        %v1997 = vld [vmem:[%s3 + $0x130] sm:$0xff]
        %v1998 = vld [vmem:[%s3 + $0x138] sm:$0xff]
        %v1999 = vld [vmem:[%s3 + $0x140] sm:$0xff]
        %v2000 = vld [vmem:[%s3 + $0x148] sm:$0xff]
        %v2001 = vld [vmem:[%s3 + $0x150] sm:$0xff]
        %v2002 = vld [vmem:[%s3 + $0x158] sm:$0xff]
        %v2003 = vld [vmem:[%s3 + $0x160] sm:$0xff]
        %v2004 = vld [vmem:[%s3 + $0x168] sm:$0xff]
        %v2005 = vld [vmem:[%s3 + $0x170] sm:$0xff]
        %v2006 = vld [vmem:[%s3 + $0x178] sm:$0xff]
        %v2007 = vld [vmem:[%s3 + $0x180] sm:$0xff]
        %v2008 = vld [vmem:[%s3 + $0x188] sm:$0xff]
        %v2009 = vld [vmem:[%s3 + $0x190] sm:$0xff]
        %v2010 = vld [vmem:[%s3 + $0x198] sm:$0xff]
        %v2011 = vld [vmem:[%s3 + $0x1a0] sm:$0xff]
        %v2012 = vld [vmem:[%s3 + $0x1a8] sm:$0xff]
        %v2013 = vld [vmem:[%s3 + $0x1b0] sm:$0xff]
        %v2014 = vld [vmem:[%s3 + $0x1b8] sm:$0xff]
        %v2015 = vld [vmem:[%s3 + $0x1c0] sm:$0xff]
        %v2016 = vld [vmem:[%s3 + $0x1c8] sm:$0xff]
        %v2017 = vld [vmem:[%s3 + $0x1d0] sm:$0xff]
        %v2018 = vld [vmem:[%s3 + $0x1d8] sm:$0xff]
        %v2019 = vld [vmem:[%s3 + $0x1e0] sm:$0xff]
        %v2020 = vld [vmem:[%s3 + $0x1e8] sm:$0xff]
        %v2021 = vld [vmem:[%s3 + $0x1f0] sm:$0xff]
        %v2022 = vld [vmem:[%s3 + $0x1f8] sm:$0xff]
        %v2023 = vld [vmem:[%s3 + $0x200] sm:$0xff]
        %v2024 = vld [vmem:[%s3 + $0x208] sm:$0xff]
        %v2025 = vld [vmem:[%s3 + $0x210] sm:$0xff]
        %v2026 = vld [vmem:[%s3 + $0x218] sm:$0xff]
        %v2027 = vld [vmem:[%s3 + $0x220] sm:$0xff]
        %v2028 = vld [vmem:[%s3 + $0x228] sm:$0xff]
        %v2029 = vld [vmem:[%s3 + $0x230] sm:$0xff]
        %v2030 = vld [vmem:[%s3 + $0x238] sm:$0xff]
        %v2031 = vld [vmem:[%s3 + $0x240] sm:$0xff]
        %v2032 = vld [vmem:[%s3 + $0x248] sm:$0xff]
        %v2033 = vld [vmem:[%s3 + $0x250] sm:$0xff]
        %v2034 = vld [vmem:[%s3 + $0x258] sm:$0xff]
        %v2035 = vld [vmem:[%s3 + $0x260] sm:$0xff]
        %v2036 = vld [vmem:[%s3 + $0x268] sm:$0xff]
        %v2037 = vld [vmem:[%s3 + $0x270] sm:$0xff]
        %v2038 = vld [vmem:[%s3 + $0x278] sm:$0xff]
        %v2039 = vld [vmem:[%s3 + $0x280] sm:$0xff]
        %v2040 = vld [vmem:[%s3 + $0x288] sm:$0xff]
        %v2041 = vld [vmem:[%s3 + $0x290] sm:$0xff]
        %v2042 = vld [vmem:[%s3 + $0x298] sm:$0xff]
        %v2043 = vld [vmem:[%s3 + $0x2a0] sm:$0xff]
        %v2044 = vld [vmem:[%s3 + $0x2a8] sm:$0xff]
        %v2045 = vld [vmem:[%s3 + $0x2b0] sm:$0xff]
        %v2046 = vld [vmem:[%s3 + $0x2b8] sm:$0xff]
        %v2047 = vld [vmem:[%s3 + $0x2c0] sm:$0xff]
        %v2048 = vld [vmem:[%s3 + $0x2c8] sm:$0xff]
        %v2049 = vld [vmem:[%s3 + $0x2d0] sm:$0xff]
        %v2050 = vld [vmem:[%s3 + $0x2d8] sm:$0xff]
        %v2051 = vld [vmem:[%s3 + $0x2e0] sm:$0xff]
        %v2052 = vld [vmem:[%s3 + $0x2e8] sm:$0xff]
        %v2053 = vld [vmem:[%s3 + $0x2f0] sm:$0xff]
        %v2054 = vld [vmem:[%s3 + $0x2f8] sm:$0xff]
        %v2055 = vld [vmem:[%s3 + $0x300] sm:$0xff]
        %v2056 = vld [vmem:[%s3 + $0x308] sm:$0xff]
        %v2057 = vld [vmem:[%s3 + $0x310] sm:$0xff]
        %v2058 = vld [vmem:[%s3 + $0x318] sm:$0xff]
        %v2059 = vld [vmem:[%s3 + $0x320] sm:$0xff]
        %v2060 = vld [vmem:[%s3 + $0x328] sm:$0xff]
        %v2061 = vld [vmem:[%s3 + $0x330] sm:$0xff]
        %v2062 = vld [vmem:[%s3 + $0x338] sm:$0xff]
        %v2063 = vld [vmem:[%s3 + $0x340] sm:$0xff]
        %v2064 = vld [vmem:[%s3 + $0x348] sm:$0xff]
        %v2065 = vld [vmem:[%s3 + $0x350] sm:$0xff]
        %v2066 = vld [vmem:[%s3 + $0x358] sm:$0xff]
        %v2067 = vld [vmem:[%s3 + $0x360] sm:$0xff]
        %v2068 = vld [vmem:[%s3 + $0x368] sm:$0xff]
        %v2069 = vld [vmem:[%s3 + $0x370] sm:$0xff]
        %v2070 = vld [vmem:[%s3 + $0x378] sm:$0xff]
        %v2071 = vld [vmem:[%s3 + $0x380] sm:$0xff]
        %v2072 = vld [vmem:[%s3 + $0x388] sm:$0xff]
        %v2073 = vld [vmem:[%s3 + $0x390] sm:$0xff]
        %v2074 = vld [vmem:[%s3 + $0x398] sm:$0xff]
        %v2075 = vld [vmem:[%s3 + $0x3a0] sm:$0xff]
        %v2076 = vld [vmem:[%s3 + $0x3a8] sm:$0xff]
        %v2077 = vld [vmem:[%s3 + $0x3b0] sm:$0xff]
        %v2078 = vld [vmem:[%s3 + $0x3b8] sm:$0xff]
        %v2079 = vld [vmem:[%s3 + $0x3c0] sm:$0xff]
        %v2080 = vld [vmem:[%s3 + $0x3c8] sm:$0xff]
        %v2081 = vld [vmem:[%s3 + $0x3d0] sm:$0xff]
        %v2082 = vld [vmem:[%s3 + $0x3d8] sm:$0xff]
        %v2083 = vld [vmem:[%s3 + $0x3e0] sm:$0xff]
        %v2084 = vld [vmem:[%s3 + $0x3e8] sm:$0xff]
        %v2085 = vld [vmem:[%s3 + $0x3f0] sm:$0xff]
        %v2086 = vld [vmem:[%s3 + $0x3f8] sm:$0xff]
        %v2087 = vld [vmem:[%s4] sm:$0xff]
        %v2089 = vlaneseq
        %v2090 = vshrl.u32 %v2089, 7
        %v2091 = vsub.s32 0, %v2090
        %v2092 = vrot.slane %v2087, %v2091
        %v2093 = vlaneseq
        %v2094 = vshrl.u32 %v2093, 7
        %v2095 = vsub.s32 1, %v2094
        %v2096 = vrot.slane %v2087, %v2095
        %v2097 = vlaneseq
        %v2098 = vshrl.u32 %v2097, 7
        %v2099 = vsub.s32 2, %v2098
        %v2100 = vrot.slane %v2087, %v2099
        %v2101 = vlaneseq
        %v2102 = vshrl.u32 %v2101, 7
        %v2103 = vsub.s32 3, %v2102
        %v2104 = vrot.slane %v2087, %v2103
        %v2105 = vlaneseq
        %v2106 = vshrl.u32 %v2105, 7
        %v2107 = vsub.s32 4, %v2106
        %v2108 = vrot.slane %v2087, %v2107
        %v2109 = vlaneseq
        %v2110 = vshrl.u32 %v2109, 7
        %v2111 = vsub.s32 5, %v2110
        %v2112 = vrot.slane %v2087, %v2111
        %v2113 = vlaneseq
        %v2114 = vshrl.u32 %v2113, 7
        %v2115 = vsub.s32 6, %v2114
        %v2116 = vrot.slane %v2087, %v2115
        %v2117 = vlaneseq
        %v2118 = vshrl.u32 %v2117, 7
        %v2119 = vsub.s32 7, %v2118
        %v2120 = vrot.slane %v2087, %v2119
        %2129 = vmatprep.subr.mxu0 %v2080
        %2130 = vmatpush1.msra.mxu0 %v2079
        %2131 = vmatprep.subr.mxu0 %v2072
        %2132 = vmatpush1.msra.mxu0 %v2071
        %2133 = vmatprep.subr.mxu0 %v2064
        %2134 = vmatpush1.msra.mxu0 %v2063
        %2135 = vmatprep.subr.mxu0 %v2056
        %2136 = vmatpush1.msra.mxu0 %v2055
        %2137 = vmatprep.subr.mxu0 %v2048
        %2138 = vmatpush1.msra.mxu0 %v2047
        %2139 = vmatprep.subr.mxu0 %v2040
        %2140 = vmatpush1.msra.mxu0 %v2039
        %2141 = vmatprep.subr.mxu0 %v2032
        %2142 = vmatpush1.msra.mxu0 %v2031
        %2143 = vmatprep.subr.mxu0 %v2024
        %2144 = vmatpush1.msra.mxu0 %v2023
        %2145 = vmatprep.subr.mxu0 %v2016
        %2146 = vmatpush1.msra.mxu0 %v2015
        %2147 = vmatprep.subr.mxu0 %v2008
        %2148 = vmatpush1.msra.mxu0 %v2007
        %2149 = vmatprep.subr.mxu0 %v2000
        %2150 = vmatpush1.msra.mxu0 %v1999
        %2151 = vmatprep.subr.mxu0 %v1992
        %2152 = vmatpush1.msra.mxu0 %v1991
        %2153 = vmatprep.subr.mxu0 %v1984
        %2154 = vmatpush1.msra.mxu0 %v1983
        %2155 = vmatprep.subr.mxu0 %v1976
        %2156 = vmatpush1.msra.mxu0 %v1975
        %2157 = vmatprep.subr.mxu0 %v1968
        %2158 = vmatpush1.msra.mxu0 %v1967
        %2159 = vmatprep.subr.mxu0 %v1960
        %2160 = vmatpush1.msra.mxu0 %v1959
        %2161 = vmatprep.subr.mxu0 0.0
        %2162 = vmatpush2.msra.mxu0 0.0
        %2163 = vmatprep.subr.mxu0 0.0
        %2164 = vmatpush2.msra.mxu0 0.0
        %2165 = vmatprep.subr.mxu0 0.0
        %2166 = vmatpush2.msra.mxu0 0.0
        %2167 = vmatprep.subr.mxu0 0.0
        %2168 = vmatpush2.msra.mxu0 0.0
        %2169 = vmatprep.subr.mxu0 0.0
        %2170 = vmatpush2.msra.mxu0 0.0
        %2171 = vmatprep.subr.mxu0 0.0
        %2172 = vmatpush2.msra.mxu0 0.0
        %2173 = vmatprep.subr.mxu0 0.0
        %2174 = vmatpush2.msra.mxu0 0.0
        %2175 = vmatprep.subr.mxu0 0.0
        %2176 = vmatpush2.msra.mxu0 0.0
        %2177 = vmatprep.subr.mxu0 0.0
        %2178 = vmatpush2.msra.mxu0 0.0
        %2179 = vmatprep.subr.mxu0 0.0
        %2180 = vmatpush2.msra.mxu0 0.0
        %2181 = vmatprep.subr.mxu0 0.0
        %2182 = vmatpush2.msra.mxu0 0.0
        %2183 = vmatprep.subr.mxu0 0.0
        %2184 = vmatpush2.msra.mxu0 0.0
        %2185 = vmatprep.subr.mxu0 0.0
        %2186 = vmatpush2.msra.mxu0 0.0
        %2187 = vmatprep.subr.mxu0 0.0
        %2188 = vmatpush2.msra.mxu0 0.0
        %2189 = vmatprep.subr.mxu0 0.0
        %2190 = vmatpush2.msra.mxu0 0.0
        %2191 = vmatprep.subr.mxu0 0.0
        %2192 = vmatpush2.msra.mxu0 0.0
        %2193 = vmatprep.mubr.f32.mxu0 0.0
        %2194 = vmatmul.mubr.f32.gmra.mxu0 %v1958
        %v2195 = vpop.f32.mrf.mxu0
        %v2196 = vadd.f32 %v2092, %v2195
        %v2197 = vpop.f32.mrf.mxu0
        %v2198 = vadd.f32 %v2096, %v2197
        %2199 = vdwg.mxu0
        %2200 = vmatprep.subr.mxu0 %v2082
        %2201 = vmatpush1.msra.mxu0 %v2081
        %2202 = vmatprep.subr.mxu0 %v2074
        %2203 = vmatpush1.msra.mxu0 %v2073
        %2204 = vmatprep.subr.mxu0 %v2066
        %2205 = vmatpush1.msra.mxu0 %v2065
        %2206 = vmatprep.subr.mxu0 %v2058
        %2207 = vmatpush1.msra.mxu0 %v2057
        %2208 = vmatprep.subr.mxu0 %v2050
        %2209 = vmatpush1.msra.mxu0 %v2049
        %2210 = vmatprep.subr.mxu0 %v2042
        %2211 = vmatpush1.msra.mxu0 %v2041
        %2212 = vmatprep.subr.mxu0 %v2034
        %2213 = vmatpush1.msra.mxu0 %v2033
        %2214 = vmatprep.subr.mxu0 %v2026
        %2215 = vmatpush1.msra.mxu0 %v2025
        %2216 = vmatprep.subr.mxu0 %v2018
        %2217 = vmatpush1.msra.mxu0 %v2017
        %2218 = vmatprep.subr.mxu0 %v2010
        %2219 = vmatpush1.msra.mxu0 %v2009
        %2220 = vmatprep.subr.mxu0 %v2002
        %2221 = vmatpush1.msra.mxu0 %v2001
        %2222 = vmatprep.subr.mxu0 %v1994
        %2223 = vmatpush1.msra.mxu0 %v1993
        %2224 = vmatprep.subr.mxu0 %v1986
        %2225 = vmatpush1.msra.mxu0 %v1985
        %2226 = vmatprep.subr.mxu0 %v1978
        %2227 = vmatpush1.msra.mxu0 %v1977
        %2228 = vmatprep.subr.mxu0 %v1970
        %2229 = vmatpush1.msra.mxu0 %v1969
        %2230 = vmatprep.subr.mxu0 %v1962
        %2231 = vmatpush1.msra.mxu0 %v1961
        %2232 = vmatprep.subr.mxu0 0.0
        %2233 = vmatpush2.msra.mxu0 0.0
        %2234 = vmatprep.subr.mxu0 0.0
        %2235 = vmatpush2.msra.mxu0 0.0
        %2236 = vmatprep.subr.mxu0 0.0
        %2237 = vmatpush2.msra.mxu0 0.0
        %2238 = vmatprep.subr.mxu0 0.0
        %2239 = vmatpush2.msra.mxu0 0.0
        %2240 = vmatprep.subr.mxu0 0.0
        %2241 = vmatpush2.msra.mxu0 0.0
        %2242 = vmatprep.subr.mxu0 0.0
        %2243 = vmatpush2.msra.mxu0 0.0
        %2244 = vmatprep.subr.mxu0 0.0
        %2245 = vmatpush2.msra.mxu0 0.0
        %2246 = vmatprep.subr.mxu0 0.0
        %2247 = vmatpush2.msra.mxu0 0.0
        %2248 = vmatprep.subr.mxu0 0.0
        %2249 = vmatpush2.msra.mxu0 0.0
        %2250 = vmatprep.subr.mxu0 0.0
        %2251 = vmatpush2.msra.mxu0 0.0
        %2252 = vmatprep.subr.mxu0 0.0
        %2253 = vmatpush2.msra.mxu0 0.0
        %2254 = vmatprep.subr.mxu0 0.0
        %2255 = vmatpush2.msra.mxu0 0.0
        %2256 = vmatprep.subr.mxu0 0.0
        %2257 = vmatpush2.msra.mxu0 0.0
        %2258 = vmatprep.subr.mxu0 0.0
        %2259 = vmatpush2.msra.mxu0 0.0
        %2260 = vmatprep.subr.mxu0 0.0
        %2261 = vmatpush2.msra.mxu0 0.0
        %2262 = vmatprep.subr.mxu0 0.0
        %2263 = vmatpush2.msra.mxu0 0.0
        %2264 = vmatprep.mubr.f32.mxu0 0.0
        %2265 = vmatmul.mubr.f32.gmra.mxu0 %v1958
        %v2266 = vpop.f32.mrf.mxu0
        %v2267 = vadd.f32 %v2100, %v2266
        %v2268 = vpop.f32.mrf.mxu0
        %v2269 = vadd.f32 %v2104, %v2268
        %2270 = vdwg.mxu0
        %2271 = vmatprep.subr.mxu0 %v2084
        %2272 = vmatpush1.msra.mxu0 %v2083
        %2273 = vmatprep.subr.mxu0 %v2076
        %2274 = vmatpush1.msra.mxu0 %v2075
        %2275 = vmatprep.subr.mxu0 %v2068
        %2276 = vmatpush1.msra.mxu0 %v2067
        %2277 = vmatprep.subr.mxu0 %v2060
        %2278 = vmatpush1.msra.mxu0 %v2059
        %2279 = vmatprep.subr.mxu0 %v2052
        %2280 = vmatpush1.msra.mxu0 %v2051
        %2281 = vmatprep.subr.mxu0 %v2044
        %2282 = vmatpush1.msra.mxu0 %v2043
        %2283 = vmatprep.subr.mxu0 %v2036
        %2284 = vmatpush1.msra.mxu0 %v2035
        %2285 = vmatprep.subr.mxu0 %v2028
        %2286 = vmatpush1.msra.mxu0 %v2027
        %2287 = vmatprep.subr.mxu0 %v2020
        %2288 = vmatpush1.msra.mxu0 %v2019
        %2289 = vmatprep.subr.mxu0 %v2012
        %2290 = vmatpush1.msra.mxu0 %v2011
        %2291 = vmatprep.subr.mxu0 %v2004
        %2292 = vmatpush1.msra.mxu0 %v2003
        %2293 = vmatprep.subr.mxu0 %v1996
        %2294 = vmatpush1.msra.mxu0 %v1995
        %2295 = vmatprep.subr.mxu0 %v1988
        %2296 = vmatpush1.msra.mxu0 %v1987
        %2297 = vmatprep.subr.mxu0 %v1980
        %2298 = vmatpush1.msra.mxu0 %v1979
        %2299 = vmatprep.subr.mxu0 %v1972
        %2300 = vmatpush1.msra.mxu0 %v1971
        %2301 = vmatprep.subr.mxu0 %v1964
        %2302 = vmatpush1.msra.mxu0 %v1963
        %2303 = vmatprep.subr.mxu0 0.0
        %2304 = vmatpush2.msra.mxu0 0.0
        %2305 = vmatprep.subr.mxu0 0.0
        %2306 = vmatpush2.msra.mxu0 0.0
        %2307 = vmatprep.subr.mxu0 0.0
        %2308 = vmatpush2.msra.mxu0 0.0
        %2309 = vmatprep.subr.mxu0 0.0
        %2310 = vmatpush2.msra.mxu0 0.0
        %2311 = vmatprep.subr.mxu0 0.0
        %2312 = vmatpush2.msra.mxu0 0.0
        %2313 = vmatprep.subr.mxu0 0.0
        %2314 = vmatpush2.msra.mxu0 0.0
        %2315 = vmatprep.subr.mxu0 0.0
        %2316 = vmatpush2.msra.mxu0 0.0
        %2317 = vmatprep.subr.mxu0 0.0
        %2318 = vmatpush2.msra.mxu0 0.0
        %2319 = vmatprep.subr.mxu0 0.0
        %2320 = vmatpush2.msra.mxu0 0.0
        %2321 = vmatprep.subr.mxu0 0.0
        %2322 = vmatpush2.msra.mxu0 0.0
        %2323 = vmatprep.subr.mxu0 0.0
        %2324 = vmatpush2.msra.mxu0 0.0
        %2325 = vmatprep.subr.mxu0 0.0
        %2326 = vmatpush2.msra.mxu0 0.0
        %2327 = vmatprep.subr.mxu0 0.0
        %2328 = vmatpush2.msra.mxu0 0.0
        %2329 = vmatprep.subr.mxu0 0.0
        %2330 = vmatpush2.msra.mxu0 0.0
        %2331 = vmatprep.subr.mxu0 0.0
        %2332 = vmatpush2.msra.mxu0 0.0
        %2333 = vmatprep.subr.mxu0 0.0
        %2334 = vmatpush2.msra.mxu0 0.0
        %2335 = vmatprep.mubr.f32.mxu0 0.0
        %2336 = vmatmul.mubr.f32.gmra.mxu0 %v1958
        %v2337 = vpop.f32.mrf.mxu0
        %v2338 = vadd.f32 %v2108, %v2337
        %v2339 = vpop.f32.mrf.mxu0
        %v2340 = vadd.f32 %v2112, %v2339
        %2341 = vdwg.mxu0
        %2342 = vmatprep.subr.mxu0 %v2086
        %2343 = vmatpush1.msra.mxu0 %v2085
        %2344 = vmatprep.subr.mxu0 %v2078
        %2345 = vmatpush1.msra.mxu0 %v2077
        %2346 = vmatprep.subr.mxu0 %v2070
        %2347 = vmatpush1.msra.mxu0 %v2069
        %2348 = vmatprep.subr.mxu0 %v2062
        %2349 = vmatpush1.msra.mxu0 %v2061
        %2350 = vmatprep.subr.mxu0 %v2054
        %2351 = vmatpush1.msra.mxu0 %v2053
        %2352 = vmatprep.subr.mxu0 %v2046
        %2353 = vmatpush1.msra.mxu0 %v2045
        %2354 = vmatprep.subr.mxu0 %v2038
        %2355 = vmatpush1.msra.mxu0 %v2037
        %2356 = vmatprep.subr.mxu0 %v2030
        %2357 = vmatpush1.msra.mxu0 %v2029
        %2358 = vmatprep.subr.mxu0 %v2022
        %2359 = vmatpush1.msra.mxu0 %v2021
        %2360 = vmatprep.subr.mxu0 %v2014
        %2361 = vmatpush1.msra.mxu0 %v2013
        %2362 = vmatprep.subr.mxu0 %v2006
        %2363 = vmatpush1.msra.mxu0 %v2005
        %2364 = vmatprep.subr.mxu0 %v1998
        %2365 = vmatpush1.msra.mxu0 %v1997
        %2366 = vmatprep.subr.mxu0 %v1990
        %2367 = vmatpush1.msra.mxu0 %v1989
        %2368 = vmatprep.subr.mxu0 %v1982
        %2369 = vmatpush1.msra.mxu0 %v1981
        %2370 = vmatprep.subr.mxu0 %v1974
        %2371 = vmatpush1.msra.mxu0 %v1973
        %2372 = vmatprep.subr.mxu0 %v1966
        %2373 = vmatpush1.msra.mxu0 %v1965
        %2374 = vmatprep.subr.mxu0 0.0
        %2375 = vmatpush2.msra.mxu0 0.0
        %2376 = vmatprep.subr.mxu0 0.0
        %2377 = vmatpush2.msra.mxu0 0.0
        %2378 = vmatprep.subr.mxu0 0.0
        %2379 = vmatpush2.msra.mxu0 0.0
        %2380 = vmatprep.subr.mxu0 0.0
        %2381 = vmatpush2.msra.mxu0 0.0
        %2382 = vmatprep.subr.mxu0 0.0
        %2383 = vmatpush2.msra.mxu0 0.0
        %2384 = vmatprep.subr.mxu0 0.0
        %2385 = vmatpush2.msra.mxu0 0.0
        %2386 = vmatprep.subr.mxu0 0.0
        %2387 = vmatpush2.msra.mxu0 0.0
        %2388 = vmatprep.subr.mxu0 0.0
        %2389 = vmatpush2.msra.mxu0 0.0
        %2390 = vmatprep.subr.mxu0 0.0
        %2391 = vmatpush2.msra.mxu0 0.0
        %2392 = vmatprep.subr.mxu0 0.0
        %2393 = vmatpush2.msra.mxu0 0.0
        %2394 = vmatprep.subr.mxu0 0.0
        %2395 = vmatpush2.msra.mxu0 0.0
        %2396 = vmatprep.subr.mxu0 0.0
        %2397 = vmatpush2.msra.mxu0 0.0
        %2398 = vmatprep.subr.mxu0 0.0
        %2399 = vmatpush2.msra.mxu0 0.0
        %2400 = vmatprep.subr.mxu0 0.0
        %2401 = vmatpush2.msra.mxu0 0.0
        %2402 = vmatprep.subr.mxu0 0.0
        %2403 = vmatpush2.msra.mxu0 0.0
        %2404 = vmatprep.subr.mxu0 0.0
        %2405 = vmatpush2.msra.mxu0 0.0
        %2406 = vmatprep.mubr.f32.mxu0 0.0
        %2407 = vmatmul.mubr.f32.gmra.mxu0 %v1958
        %v2408 = vpop.f32.mrf.mxu0
        %v2409 = vadd.f32 %v2116, %v2408
        %v2410 = vpop.f32.mrf.mxu0
        %v2411 = vadd.f32 %v2120, %v2410
        %2412 = vdwg.mxu0
        %v2413 = vlaneseq
        %v2414 = vand.u32 %v2413, 127
        %v2415 = vadd.s32 %v2414, 128
        %v2416 = vadd.s32 %v2414, 256
        %v2417 = vadd.s32 %v2414, 384
        %v2418 = vadd.s32 %v2414, 512
        %v2419 = vadd.s32 %v2414, 640
        %v2420 = vadd.s32 %v2414, 768
        %v2421 = vadd.s32 %v2414, 896
        %vm2422 = vcmp.lt.s32.totalorder %v2414, 1000
        %vm2423 = vcmp.lt.s32.totalorder %v2415, 1000
        %vm2424 = vcmp.lt.s32.totalorder %v2416, 1000
        %vm2425 = vcmp.lt.s32.totalorder %v2417, 1000
        %vm2426 = vcmp.lt.s32.totalorder %v2418, 1000
        %vm2427 = vcmp.lt.s32.totalorder %v2419, 1000
        %vm2428 = vcmp.lt.s32.totalorder %v2420, 1000
        %vm2429 = vcmp.lt.s32.totalorder %v2421, 1000
        %v2430 = vsel %vm2422, %v2196, -1e+30
        %v2431 = vsel %vm2423, %v2198, -1e+30
        %v2432 = vsel %vm2424, %v2267, -1e+30
        %v2433 = vsel %vm2425, %v2269, -1e+30
        %v2434 = vsel %vm2426, %v2338, -1e+30
        %v2435 = vsel %vm2427, %v2340, -1e+30
        %v2436 = vsel %vm2428, %v2409, -1e+30
        %v2437 = vsel %vm2429, %v2411, -1e+30
        %vm2438 = vcmask 1040384
        %v2439 = vsel %vm2438, %v2430, -inf
        %v2440 = vsel %vm2438, %v2431, -inf
        %v2441 = vsel %vm2438, %v2432, -inf
        %v2442 = vsel %vm2438, %v2433, -inf
        %v2443 = vsel %vm2438, %v2434, -inf
        %v2444 = vmax.f32 %v2439, %v2443
        %v2445 = vsel %vm2438, %v2435, -inf
        %v2446 = vmax.f32 %v2440, %v2445
        %v2447 = vsel %vm2438, %v2436, -inf
        %v2448 = vmax.f32 %v2441, %v2447
        %v2449 = vsel %vm2438, %v2437, -inf
        %v2450 = vmax.f32 %v2442, %v2449
        %v2451 = vmax.f32 %v2444, %v2446
        %v2452 = vmax.f32 %v2448, %v2450
        %v2453 = vmax.f32 %v2451, %v2452
        %2454 = vmax.xlane.f32.xlu0 %v2453
        %v2455 = vpop.xlane.xlu0 %2454
        %v2456 = vsub.f32 %v2430, %v2455
        %v2457 = vsub.f32 %v2431, %v2455
        %v2458 = vsub.f32 %v2432, %v2455
        %v2459 = vsub.f32 %v2433, %v2455
        %v2460 = vsub.f32 %v2434, %v2455
        %v2461 = vsub.f32 %v2435, %v2455
        %v2462 = vsub.f32 %v2436, %v2455
        %v2463 = vsub.f32 %v2437, %v2455
        %v2464 = vmul.f32 %v2456, 1.442695
        %v2465 = vpow.pop %v2464
        %v2466 = vmul.f32 %v2457, 1.442695
        %v2467 = vpow.pop %v2466
        %v2468 = vmul.f32 %v2458, 1.442695
        %v2469 = vpow.pop %v2468
        %v2470 = vmul.f32 %v2459, 1.442695
        %v2471 = vpow.pop %v2470
        %v2472 = vmul.f32 %v2460, 1.442695
        %v2473 = vpow.pop %v2472
        %v2474 = vmul.f32 %v2461, 1.442695
        %v2475 = vpow.pop %v2474
        %v2476 = vmul.f32 %v2462, 1.442695
        %v2477 = vpow.pop %v2476
        %v2478 = vmul.f32 %v2463, 1.442695
        %v2479 = vpow.pop %v2478
        %v2480 = vsel %vm2438, %v2465, 0.0
        %v2481 = vsel %vm2438, %v2467, 0.0
        %v2482 = vadd.f32 %v2480, %v2481
        %v2483 = vsel %vm2438, %v2469, 0.0
        %v2484 = vadd.f32 %v2482, %v2483
        %v2485 = vsel %vm2438, %v2471, 0.0
        %v2486 = vadd.f32 %v2484, %v2485
        %v2487 = vsel %vm2438, %v2473, 0.0
        %v2488 = vadd.f32 %v2486, %v2487
        %v2489 = vsel %vm2438, %v2475, 0.0
        %v2490 = vadd.f32 %v2488, %v2489
        %v2491 = vsel %vm2438, %v2477, 0.0
        %v2492 = vadd.f32 %v2490, %v2491
        %v2493 = vsel %vm2438, %v2479, 0.0
        %v2494 = vadd.f32 %v2492, %v2493
        %2495 = vadd.xlane.f32.xlu0 %v2494
        %v2496 = vpop.xlane.xlu0 %2495
        %v2497 = vrcp.pop %v2496
        %v2498 = vmul.f32 %v2465, %v2497
        %v2499 = vmul.f32 %v2467, %v2497
        %v2500 = vmul.f32 %v2469, %v2497
        %v2501 = vmul.f32 %v2471, %v2497
        %v2502 = vmul.f32 %v2473, %v2497
        %v2503 = vmul.f32 %v2475, %v2497
        %v2504 = vmul.f32 %v2477, %v2497
        %v2505 = vmul.f32 %v2479, %v2497
        %v2514 = vcombine.low %v2498, %v2499
        %v2515 = vcombine.low %v2500, %v2501
        %v2516 = vcombine.low %v2502, %v2503
        %v2517 = vcombine.low %v2504, %v2505
        %v2519 = vunpack.c.l.s4 1966171168
        %v2520 = vunpack.c.0.s8 %v2519
        %v2521 = vlaneseq
        %v2522 = vshrl.u32 %v2521, 7
        %v2523 = vsub.s32 %v2520, %v2522
        %v2524 = vrot.slane %v2514, %v2523
        %v2526 = vunpack.c.l.s4 1966171168
        %v2527 = vunpack.c.0.s8 %v2526
        %v2528 = vlaneseq
        %v2529 = vshrl.u32 %v2528, 7
        %v2530 = vsub.s32 %v2527, %v2529
        %v2531 = vrot.slane %v2515, %v2530
        %v2533 = vunpack.c.l.s4 1966171168
        %v2534 = vunpack.c.0.s8 %v2533
        %v2535 = vlaneseq
        %v2536 = vshrl.u32 %v2535, 7
        %v2537 = vsub.s32 %v2534, %v2536
        %v2538 = vrot.slane %v2516, %v2537
        %v2540 = vunpack.c.l.s4 1966171168
        %v2541 = vunpack.c.0.s8 %v2540
        %v2542 = vlaneseq
        %v2543 = vshrl.u32 %v2542, 7
        %v2544 = vsub.s32 %v2541, %v2543
        %v2545 = vrot.slane %v2517, %v2544
        %v2546 = vcombine.low %v2524, %v2531
        %v2547 = vcombine.low %v2538, %v2545
        %v2549 = vunpack.c.l.s4 1966171168
        %v2550 = vunpack.c.0.s8 %v2549
        %v2551 = vlaneseq
        %v2552 = vshrl.u32 %v2551, 7
        %v2553 = vsub.s32 %v2550, %v2552
        %v2554 = vrot.slane %v2546, %v2553
        %v2556 = vunpack.c.l.s4 1966171168
        %v2557 = vunpack.c.0.s8 %v2556
        %v2558 = vlaneseq
        %v2559 = vshrl.u32 %v2558, 7
        %v2560 = vsub.s32 %v2557, %v2559
        %v2561 = vrot.slane %v2547, %v2560
        %v2562 = vcombine.low %v2554, %v2561
        %2564 = vst [vmem:[%s248] sm:$0xff] %v2562
      $region48: #{classification_backbone_forward.1} parent=39 // pred_fallthru
        _
      %p2565 = scmp.lt.s32.totalorder %s20, 1
      %s2566 = scalar_select %p2565, %s20, 1
      %s2567 = smul.addr %s2566, 8
      %s2568 = scalar_lea.vmem %s5, %s2567
      // Predicated region
      $region49: #{classification_backbone_forward.1} parent=39 // pred_check
        %p2569 = pneg %p158
      $region50: #{classification_backbone_forward.1} parent=39 // pred_check_branch
        %2571 = sbr.rel (%p2569) target = $region52
      $region51: #{classification_backbone_forward.1} parent=39 // pred_region
        _
      $region52: #{classification_backbone_forward.1} parent=39 // pred_fallthru
        _
    $region40: #{classification_backbone_forward.1} parent=5 // pred_fallthru
      _
    %p2572 = scmp.le.s32.totalorder 2, %s11
    // Predicated region
    $region53: #{classification_backbone_forward.1} parent=5 // pred_check
      %p2573 = pneg %p2572
    $region54: #{classification_backbone_forward.1} parent=5 // pred_check_branch
      %2575 = sbr.rel (%p2573) target = $region56
    $region55: #{classification_backbone_forward.1} parent=5 // pred_region
      %s2576 = ssub.s32 %s11, 2
      // Predicated region
      $region57: #{classification_backbone_forward.1} parent=55 // pred_check
        %p2577 = pneg %p164
      $region58: #{classification_backbone_forward.1} parent=55 // pred_check_branch
        %2579 = sbr.rel (%p2577) target = $region60
      $region59: #{classification_backbone_forward.1} parent=55 // pred_region
        %p2580 = scmp.lt.s32.totalorder %s22, 1
        %s2581 = scalar_select %p2580, %s22, 1
        %s2582 = smul.addr %s2581, 8
        %s2583 = scalar_lea.vmem %s5, %s2582
      $region60: #{classification_backbone_forward.1} parent=55 // pred_fallthru
        _
    $region56: #{classification_backbone_forward.1} parent=5 // pred_fallthru
      _
  $region6: #{classification_backbone_forward.1} parent=0 // loop_footer
    %s15 = sadd.s32 1, %s11
  $region7: #{classification_backbone_forward.1} parent=0 // loop_footer_branch
    %10 = sbr.rel target = $region3
  $region8: #{classification_backbone_forward.1} parent=0 // loop_exit
    _

</llo_original>
